<compile_context>
chip_gen: v7x
topology: tpu7x:2x2x1
jax: 0.10.0
libtpu: 0.0.40
codegen_flags: <defaults>
</compile_context>

<pallas_src>
import math
import functools

import jax
import jax.numpy as jnp
from jax.experimental import pallas as pl
from jax.experimental.pallas import tpu as pltpu


def _leaky_relu_gain(negative_slope=0.01):
    # torch.nn.init.calculate_gain('leaky_relu') with default param 0.01
    return math.sqrt(2.0 / (1.0 + negative_slope ** 2))


_MiB = 1024 * 1024


def _round_up(v, m):
    return ((v + m - 1) // m) * m


def _cdiv(a, b):
    return -(-a // b)


@functools.lru_cache(maxsize=1)
def _vmem_params():
    """(vmem_limit_bytes, tile_target_bytes), generation-aware."""
    cap = None
    try:
        cap = int(getattr(pltpu.get_tpu_info(), "vmem_capacity_bytes"))
    except Exception:
        cap = None
    if cap is not None and cap >= 96 * _MiB:
        # v5e / v6e: 128 MiB physical VMEM -> larger scoped limit, bigger tiles
        return 64 * _MiB, 4 * _MiB
    # v7x (64 MiB per TensorCore) or unknown -> stay conservative
    return 32 * _MiB, 2 * _MiB


# ----------------------------- kernels --------------------------------------


def _spatial_norm_kernel(*refs, k2, scalar_scale, has_scale, has_shift):
    # x_ref: (C, K2, Ht, W)   scale/shift (optional): (C, K2, 1, W)
    it = iter(refs)
    x_ref = next(it)
    scale_ref = next(it) if has_scale else None
    shift_ref = next(it) if has_shift else None
    o_ref = next(it)

    x = x_ref[...].astype(jnp.float32)
    # reduce over the leading K2 axis: plain VPU adds across planes, no XLU.
    mu = jnp.mean(x, axis=1, keepdims=True)                    # (C, 1, Ht, W)
    xc = x - mu
    # unbiased std (matches torch.Tensor.std default, correction=1)
    var = jnp.sum(xc * xc, axis=1, keepdims=True) / float(k2 - 1)
    inv = pl.reciprocal(jnp.sqrt(var) + 1e-10, approx=False)   # reduced tensor
    if not has_scale:
        inv = inv * scalar_scale          # fold scalar scale into reduced tensor
    xn = xc * inv
    if has_scale:
        xn = xn * scale_ref[...].astype(jnp.float32)           # sublane bcast
    if has_shift:
        xn = xn + shift_ref[...].astype(jnp.float32)
    o_ref[...] = xn.astype(o_ref.dtype)


def _spectral_norm_kernel(*refs, m, scalar_scale, has_scale, has_shift):
    # x_ref: (Bt, C, M)   scale/shift (optional): (C, M)
    it = iter(refs)
    x_ref = next(it)
    scale_ref = next(it) if has_scale else None
    shift_ref = next(it) if has_shift else None
    o_ref = next(it)

    x = x_ref[...].astype(jnp.float32)
    mu = jnp.mean(x, axis=2, keepdims=True)                    # (Bt, C, 1)
    xc = x - mu
    var = jnp.sum(xc * xc, axis=2, keepdims=True) / float(m - 1)
    inv = pl.reciprocal(jnp.sqrt(var) + 1e-10, approx=False)
    if not has_scale:
        inv = inv * scalar_scale
    xn = xc * inv
    if has_scale:
        xn = xn * scale_ref[...].astype(jnp.float32)[None, :, :]
    if has_shift:
        xn = xn + shift_ref[...].astype(jnp.float32)[None, :, :]
    o_ref[...] = xn.astype(o_ref.dtype)


# ----------------------------- tile sizing -----------------------------------


def _pick_h_tile(c, k2, h, w, itemsize, vmem_limit, tile_target, batch):
    """Tile of the H axis for a (C, K2, h_tile, W) block.

    Accounts for (8,128) VMEM padding, dtype itemsize, 2x-in + 2x-out double
    buffers and ~3 f32 temporaries.  Prefers exact divisors of H (no masked
    tail) and guarantees >=2 total grid steps when possible (v7x: 2 TCs).
    """
    w_pad = _round_up(max(w, 1), 128)

    def io_bytes(ht):
        return c * k2 * _round_up(ht, 8) * w_pad * itemsize

    def footprint(ht):
        f32 = c * k2 * _round_up(ht, 8) * w_pad * 4
        return 4 * io_bytes(ht) + 3 * f32

    # candidates: divisors of H (full H always allowed; others multiple of 8),
    # then non-divisor multiples of 8 as a masked-tail fallback.  Descending.
    divisors = [d for d in range(h, 0, -1)
                if h % d == 0 and (d % 8 == 0 or d == h)]
    fallback = [d for d in range(8 * (h // 8), 7, -8) if h % d != 0]
    cands = divisors + fallback

    budget = (3 * vmem_limit) // 4
    within = [d for d in cands if footprint(d) <= budget]
    if within:
        at_target = [d for d in within if io_bytes(d) <= tile_target]
        h_tile = at_target[0] if at_target else min(within, key=io_bytes)
    else:
        h_tile = min(cands, key=io_bytes)

    # v7x has 2 TensorCores sharing HBM: avoid a 1-step grid when we can split.
    if batch * _cdiv(h, h_tile) < 2:
        for d in cands:
            if _cdiv(h, d) >= 2 and footprint(d) <= budget:
                h_tile = d
                break
    return h_tile


def _pick_b_tile(b, c, m, itemsize, vmem_limit, tile_target):
    c_pad = _round_up(c, 8)
    m_pad = _round_up(m, 128)
    per_b_io = c_pad * m_pad * itemsize
    per_b_f32 = c_pad * m_pad * 4
    budget = (3 * vmem_limit) // 4
    bt = max(1, min(b, tile_target // max(per_b_io, 1)))
    while bt > 1 and 4 * bt * per_b_io + 3 * bt * per_b_f32 > budget:
        bt -= 1
    # prefer a divisor of b (no masked tail)
    while bt > 1 and b % bt != 0:
        bt -= 1
    return bt


# ----------------------------- pallas wrappers -------------------------------


def _spatial_norm(x5, scale, shift, scalar_scale):
    # x5: (B, C, K2, H, W) -- produced by a *major-dim-only* reshape (free).
    # scale/shift: (C, K2, 1, W) f32 or None.
    B, C, K2, H, W = x5.shape
    assert K2 > 1, "kernel_size must be > 1 (unbiased std needs N-1 > 0)"
    vmem_limit, tile_target = _vmem_params()
    h_tile = _pick_h_tile(C, K2, H, W, x5.dtype.itemsize,
                          vmem_limit, tile_target, B)
    num_t = _cdiv(H, h_tile)
    has_scale = scale is not None
    has_shift = shift is not None

    in_specs = [pl.BlockSpec((pl.Squeezed(), C, K2, h_tile, W),
                             lambda b, t: (b, 0, 0, t, 0))]
    args = [x5]
    if has_scale:
        in_specs.append(pl.BlockSpec((C, K2, 1, W), lambda b, t: (0, 0, 0, 0)))
        args.append(scale)
    if has_shift:
        in_specs.append(pl.BlockSpec((C, K2, 1, W), lambda b, t: (0, 0, 0, 0)))
        args.append(shift)

    kernel = functools.partial(
        _spatial_norm_kernel, k2=K2,
        scalar_scale=(1.0 if scalar_scale is None else float(scalar_scale)),
        has_scale=has_scale, has_shift=has_shift)

    return pl.pallas_call(
        kernel,
        out_shape=jax.ShapeDtypeStruct((B, C, K2, H, W), x5.dtype),
        grid_spec=pltpu.PrefetchScalarGridSpec(
            num_scalar_prefetch=0,
            grid=(B, num_t),
            in_specs=in_specs,
            out_specs=pl.BlockSpec((pl.Squeezed(), C, K2, h_tile, W),
                                   lambda b, t: (b, 0, 0, t, 0)),
        ),
        compiler_params=pltpu.CompilerParams(
            dimension_semantics=("parallel", "parallel"),
            vmem_limit_bytes=vmem_limit),
    )(*args)


def _spectral_norm(x3, scale, shift, scalar_scale):
    # x3: (B, C, M); scale/shift: (C, M) f32 or None.
    # NOTE: for typical ADKG spectral shapes this tensor is a few KiB; plain
    # XLA fusion would be cheaper than a pallas_call dispatch, but the Pallas
    # kernel is kept so the whole module stays kernelized.
    B, C, M = x3.shape
    assert M > 1, "spectral flattened size must be > 1 (unbiased std)"
    vmem_limit, tile_target = _vmem_params()
    b_tile = _pick_b_tile(B, C, M, x3.dtype.itemsize, vmem_limit, tile_target)
    num_b = _cdiv(B, b_tile)
    has_scale = scale is not None
    has_shift = shift is not None

    in_specs = [pl.BlockSpec((b_tile, C, M), lambda t: (t, 0, 0))]
    args = [x3]
    if has_scale:
        in_specs.append(pl.BlockSpec((C, M), lambda t: (0, 0)))
        args.append(scale)
    if has_shift:
        in_specs.append(pl.BlockSpec((C, M), lambda t: (0, 0)))
        args.append(shift)

    kernel = functools.partial(
        _spectral_norm_kernel, m=M,
        scalar_scale=(1.0 if scalar_scale is None else float(scalar_scale)),
        has_scale=has_scale, has_shift=has_shift)

    return pl.pallas_call(
        kernel,
        out_shape=jax.ShapeDtypeStruct((B, C, M), x3.dtype),
        grid_spec=pltpu.PrefetchScalarGridSpec(
            num_scalar_prefetch=0,
            grid=(num_b,),
            in_specs=in_specs,
            out_specs=pl.BlockSpec((b_tile, C, M), lambda t: (t, 0, 0)),
        ),
        compiler_params=pltpu.CompilerParams(
            dimension_semantics=("parallel",),
            vmem_limit_bytes=vmem_limit),
    )(*args)


# ----------------------------- module-equivalent -----------------------------


class NormPallas:
    """JAX/Pallas equivalent of ADKG.Norm (forward pass)."""

    def __init__(self, in_channels, kernel_size, filter_type,
                 nonlinearity='leaky_relu', running_std=False,
                 running_mean=False, key=None, dtype=jnp.float32):
        assert filter_type in ('spatial', 'spectral')
        assert in_channels >= 1
        self.in_channels = in_channels
        self.kernel_size = kernel_size
        self.filter_type = filter_type
        self.running_std = running_std
        self.running_mean = running_mean
        std = _leaky_relu_gain() / kernel_size  # calculate_gain('leaky_relu')/k
        n = in_channels * kernel_size ** 2
        if key is None:
            key = jax.random.PRNGKey(0)
        k_std, k_mean = jax.random.split(key)
        if running_std:
            self.std = (jax.random.normal(k_std, (n,), dtype) * std)
        else:
            self.std = std
        if running_mean:
            self.mean = jax.random.normal(k_mean, (n,), dtype)
        else:
            self.mean = None

    # ---- parameter prep ------------------------------------------------

    def _spatial_scale_shift(self, c, k2, w):
        scale = shift = None
        scalar = None
        if self.running_std:
            s = jnp.reshape(self.std, (c, k2)).astype(jnp.float32)
            scale = jnp.broadcast_to(s[:, :, None, None], (c, k2, 1, w))
        else:
            scalar = float(self.std)
        if self.running_mean:
            m = jnp.reshape(self.mean, (c, k2)).astype(jnp.float32)
            shift = jnp.broadcast_to(m[:, :, None, None], (c, k2, 1, w))
        return scale, shift, scalar

    def _spectral_scale_shift(self, c, m):
        scale = shift = None
        scalar = None
        if self.running_std:
            scale = jnp.reshape(self.std, (c, m)).astype(jnp.float32)
        else:
            scalar = float(self.std)
        if self.running_mean:
            shift = jnp.reshape(self.mean, (c, m)).astype(jnp.float32)
        return scale, shift, scalar

    # ---- forward ---------------------------------------------------------

    def __call__(self, x):
        if self.filter_type == 'spatial':
            b, ctot, h, w = x.shape
            c = self.in_channels
            k2 = ctot // c
            # Split the channel dim only -- (H, W) minors untouched, so this
            # reshape is a free bitcast (no HBM relayout).
            x5 = x.reshape(b, c, k2, h, w)
            scale, shift, scalar = self._spatial_scale_shift(c, k2, w)
            y = _spatial_norm(x5, scale, shift, scalar)
            return y.reshape(b, ctot, h, w)
        else:  # 'spectral'
            b = x.shape[0]
            c = self.in_channels
            m = x.size // (b * c)
            x3 = x.reshape(b, c, m)     # tiny tensor; relayout cost negligible
            scale, shift, scalar = self._spectral_scale_shift(c, m)
            y = _spectral_norm(x3, scale, shift, scalar)
            return y.reshape(b, -1)


# ----------------------------- reference (plain JAX) --------------------------


def _ref_forward(mod, x):
    if mod.filter_type == 'spatial':
        b, ctot, h, w = x.shape
        c = mod.in_channels
        xr = x.reshape(b, c, -1, h, w)
        mu = xr.mean(axis=2, keepdims=True)
        sd = jnp.std(xr, axis=2, keepdims=True, ddof=1)
        xr = (xr - mu) / (sd + 1e-10)
        xr = xr.reshape(b, ctot, h, w)
        if mod.running_std:
            xr = xr * mod.std[None, :, None, None]
        else:
            xr = xr * mod.std
        if mod.running_mean:
            xr = xr + mod.mean[None, :, None, None]
        return xr
    else:
        b = x.shape[0]
        c = mod.in_channels
        xr = x.reshape(b, c, -1)
        mu = xr.mean(axis=2, keepdims=True)
        sd = jnp.std(xr, axis=2, keepdims=True, ddof=1)
        xr = (xr - mu) / (sd + 1e-10)
        xr = xr.reshape(b, -1)
        if mod.running_std:
            xr = xr * mod.std[None, :]
        else:
            xr = xr * mod.std
        if mod.running_mean:
            xr = xr + mod.mean[None, :]
        return xr


# ----------------------------- demo ------------------------------------------


if __name__ == "__main__":
    key = jax.random.PRNGKey(0)
    kx1, kx2, kx3, kx4, kp1, kp2 = jax.random.split(key, 6)

    B, C, K = 2, 4, 3
    K2 = K * K

    # --- spatial case, learned scale/shift (running_std + running_mean) ---
    H = W = 16
    x_spatial = jax.random.normal(kx1, (B, C * K2, H, W), jnp.float32)
    norm_spatial = NormPallas(C, K, 'spatial', running_std=True,
                              running_mean=True, key=kp1)
    y_sp = jax.block_until_ready(norm_spatial(x_spatial))
    y_sp_ref = _ref_forward(norm_spatial, x_spatial)
    assert y_sp.shape == x_spatial.shape
    assert jnp.allclose(y_sp, y_sp_ref, atol=1e-5, rtol=1e-5)

    # --- spatial case, scalar std (no scale/shift inputs at all) ---
    H2 = W2 = 32
    x_spatial2 = jax.random.normal(kx2, (B, C * K2, H2, W2), jnp.float32)
    norm_spatial2 = NormPallas(C, K, 'spatial', running_std=False,
                               running_mean=False)
    y_sp2 = jax.block_until_ready(norm_spatial2(x_spatial2))
    y_sp2_ref = _ref_forward(norm_spatial2, x_spatial2)
    assert y_sp2.shape == x_spatial2.shape
    assert jnp.allclose(y_sp2, y_sp2_ref, atol=1e-5, rtol=1e-5)

    # --- spectral case (scalar std, no running mean) ---
    x_spectral = jax.random.normal(kx3, (B, C, K, K), jnp.float32)
    norm_spectral = NormPallas(C, K, 'spectral', running_std=False,
                               running_mean=False, key=kp2)
    y_sc = jax.block_until_ready(norm_spectral(x_spectral))
    y_sc_ref = _ref_forward(norm_spectral, x_spectral)
    assert y_sc.shape == (B, C * K2)
    assert jnp.allclose(y_sc, y_sc_ref, atol=1e-5, rtol=1e-5)

    # --- spectral case with learned scale/shift ---
    x_spectral2 = jax.random.normal(kx4, (B, C, K, K), jnp.float32)
    norm_spectral2 = NormPallas(C, K, 'spectral', running_std=True,
                                running_mean=True, key=kp2)
    y_sc2 = jax.block_until_ready(norm_spectral2(x_spectral2))
    y_sc2_ref = _ref_forward(norm_spectral2, x_spectral2)
    assert y_sc2.shape == (B, C * K2)
    assert jnp.allclose(y_sc2, y_sc2_ref, atol=1e-5, rtol=1e-5)

    print("KERNEL_OK")
</pallas_src>

<mosaic_0001>
module attributes {stable_mosaic.version = 11 : i64} {
  func.func @_spatial_norm_kernel(%arg0: i32, %arg1: i32, %arg2: memref<1x4x9x16x16xf32, #tpu.memory_space<vmem>>, %arg3: memref<4x9x1x16xf32, #tpu.memory_space<vmem>>, %arg4: memref<4x9x1x16xf32, #tpu.memory_space<vmem>>, %arg5: memref<1x4x9x16x16xf32, #tpu.memory_space<vmem>>) attributes {dimension_semantics = [#tpu.dimension_semantics<parallel>, #tpu.dimension_semantics<parallel>], iteration_bounds = array<i64: 2, 1>, scalar_prefetch = 0 : i64, scratch_operands = 0 : i64, tpu.core_type = #tpu.core_type<tc>, window_params = [{transform_indices = @transform_0, window_bounds = array<i64: 1, 4, 9, 16, 16>}, {pipeline_mode = #tpu.pipeline_mode<synchronous>, transform_indices = @transform_1, window_bounds = array<i64: 4, 9, 1, 16>}, {pipeline_mode = #tpu.pipeline_mode<synchronous>, transform_indices = @transform_2, window_bounds = array<i64: 4, 9, 1, 16>}, {transform_indices = @transform_3, window_bounds = array<i64: 1, 4, 9, 16, 16>}]} {
    %c0 = arith.constant 0 : index
    %c0_0 = arith.constant 0 : index
    %c0_1 = arith.constant 0 : index
    %c0_2 = arith.constant 0 : index
    %c0_3 = arith.constant 0 : index
    %0 = vector.load %arg2[%c0, %c0_0, %c0_1, %c0_2, %c0_3] : memref<1x4x9x16x16xf32, #tpu.memory_space<vmem>>, vector<1x4x9x16x16xf32>
    %1 = vector.shape_cast %0 : vector<1x4x9x16x16xf32> to vector<4x9x16x16xf32>
    %cst = arith.constant dense<0.000000e+00> : vector<4x16x16xf32>
    %2 = vector.multi_reduction <add>, %1, %cst [1] : vector<4x9x16x16xf32> to vector<4x16x16xf32>
    %3 = vector.shape_cast %2 : vector<4x16x16xf32> to vector<4x1x16x16xf32>
    %cst_4 = arith.constant 9.000000e+00 : f32
    %4 = vector.broadcast %cst_4 : f32 to vector<4x1x16x16xf32>
    %5 = arith.divf %3, %4 : vector<4x1x16x16xf32>
    %6 = vector.broadcast %5 : vector<4x1x16x16xf32> to vector<4x9x16x16xf32>
    %7 = arith.subf %1, %6 : vector<4x9x16x16xf32>
    %8 = arith.mulf %7, %7 : vector<4x9x16x16xf32>
    %cst_5 = arith.constant dense<0.000000e+00> : vector<4x16x16xf32>
    %9 = vector.multi_reduction <add>, %8, %cst_5 [1] : vector<4x9x16x16xf32> to vector<4x16x16xf32>
    %10 = vector.shape_cast %9 : vector<4x16x16xf32> to vector<4x1x16x16xf32>
    %cst_6 = arith.constant 8.000000e+00 : f32
    %11 = vector.broadcast %cst_6 : f32 to vector<4x1x16x16xf32>
    %12 = arith.divf %10, %11 : vector<4x1x16x16xf32>
    %13 = math.sqrt %12 : vector<4x1x16x16xf32>
    %cst_7 = arith.constant 1.000000e-10 : f32
    %14 = vector.broadcast %cst_7 : f32 to vector<4x1x16x16xf32>
    %15 = arith.addf %13, %14 : vector<4x1x16x16xf32>
    %16 = tpu.reciprocal %15 : vector<4x1x16x16xf32> -> vector<4x1x16x16xf32>
    %17 = vector.broadcast %16 : vector<4x1x16x16xf32> to vector<4x9x16x16xf32>
    %18 = arith.mulf %7, %17 : vector<4x9x16x16xf32>
    %c0_8 = arith.constant 0 : index
    %c0_9 = arith.constant 0 : index
    %c0_10 = arith.constant 0 : index
    %c0_11 = arith.constant 0 : index
    %19 = vector.load %arg3[%c0_8, %c0_9, %c0_10, %c0_11] : memref<4x9x1x16xf32, #tpu.memory_space<vmem>>, vector<4x9x1x16xf32>
    %20 = vector.broadcast %19 : vector<4x9x1x16xf32> to vector<4x9x16x16xf32>
    %21 = arith.mulf %18, %20 : vector<4x9x16x16xf32>
    %c0_12 = arith.constant 0 : index
    %c0_13 = arith.constant 0 : index
    %c0_14 = arith.constant 0 : index
    %c0_15 = arith.constant 0 : index
    %22 = vector.load %arg4[%c0_12, %c0_13, %c0_14, %c0_15] : memref<4x9x1x16xf32, #tpu.memory_space<vmem>>, vector<4x9x1x16xf32>
    %23 = vector.broadcast %22 : vector<4x9x1x16xf32> to vector<4x9x16x16xf32>
    %24 = arith.addf %21, %23 : vector<4x9x16x16xf32>
    %c0_16 = arith.constant 0 : index
    %c0_17 = arith.constant 0 : index
    %c0_18 = arith.constant 0 : index
    %c0_19 = arith.constant 0 : index
    %c0_20 = arith.constant 0 : index
    %25 = vector.load %arg5[%c0_16, %c0_17, %c0_18, %c0_19, %c0_20] : memref<1x4x9x16x16xf32, #tpu.memory_space<vmem>>, vector<1x4x9x16x16xf32>
    %26 = vector.shape_cast %25 : vector<1x4x9x16x16xf32> to vector<4x9x16x16xf32>
    %27 = vector.shape_cast %24 : vector<4x9x16x16xf32> to vector<1x4x9x16x16xf32>
    tpu.vector_store %arg5[%c0_16, %c0_17, %c0_18, %c0_19, %c0_20], %27 {strides = array<i32>} : memref<1x4x9x16x16xf32, #tpu.memory_space<vmem>>, vector<1x4x9x16x16xf32>,
    return
  }
  func.func @transform_0(%arg0: i32, %arg1: i32) -> (i32, i32, i32, i32, i32) {
    %c0_i32 = arith.constant 0 : i32
    %c0_i32_0 = arith.constant 0 : i32
    %c0_i32_1 = arith.constant 0 : i32
    %c0_i32_2 = arith.constant 0 : i32
    return %arg0, %c0_i32, %c0_i32_0, %arg1, %c0_i32_1 : i32, i32, i32, i32, i32
  }
  func.func @transform_1(%arg0: i32, %arg1: i32) -> (i32, i32, i32, i32) {
    %c0_i32 = arith.constant 0 : i32
    %c0_i32_0 = arith.constant 0 : i32
    %c0_i32_1 = arith.constant 0 : i32
    %c0_i32_2 = arith.constant 0 : i32
    %c0_i32_3 = arith.constant 0 : i32
    return %c0_i32, %c0_i32_0, %c0_i32_1, %c0_i32_2 : i32, i32, i32, i32
  }
  func.func @transform_2(%arg0: i32, %arg1: i32) -> (i32, i32, i32, i32) {
    %c0_i32 = arith.constant 0 : i32
    %c0_i32_0 = arith.constant 0 : i32
    %c0_i32_1 = arith.constant 0 : i32
    %c0_i32_2 = arith.constant 0 : i32
    %c0_i32_3 = arith.constant 0 : i32
    return %c0_i32, %c0_i32_0, %c0_i32_1, %c0_i32_2 : i32, i32, i32, i32
  }
  func.func @transform_3(%arg0: i32, %arg1: i32) -> (i32, i32, i32, i32, i32) {
    %c0_i32 = arith.constant 0 : i32
    %c0_i32_0 = arith.constant 0 : i32
    %c0_i32_1 = arith.constant 0 : i32
    %c0_i32_2 = arith.constant 0 : i32
    return %arg0, %c0_i32, %c0_i32_0, %arg1, %c0_i32_1 : i32, i32, i32, i32, i32
  }
}

</mosaic_0001>

<llo_original>
// kernel: tpu_custom_call.1
$region0: #{tpu_custom_call.1}
  #allocation0 [shape = 'u32[]', space=smem, size = 0x4, offset = 0x4, fixed_abs, tag = 'smem constant byte address 0x4 - core index']
  #allocation1 [shape = 'u32[144,128]{1,0:T(1,128)}', space=vmem, size = 0x12000, scoped, tag = 'internal scratch']
  %s0 = inlined_call_operand.hbm [shape: f32[2,4,9,16,16], index: 0, kind: input, shape index: {}]
  %s1 = inlined_call_operand.hbm [shape: f32[4,9,1,16], index: 1, kind: input, shape index: {}]
  %s2 = inlined_call_operand.hbm [shape: f32[4,9,1,16], index: 2, kind: input, shape index: {}]
  %s3 = inlined_call_operand.hbm [shape: f32[2,4,9,16,16], index: 3, kind: output, shape index: {}]
  %s4 = sld [smem:[#allocation0]]
  $region57: #{tpu_custom_call.1} parent=0
    _
  %s6 = ssub.s32 1, %s4
  %s7 = scalar_select 0, %s6, %s4
  $region1: #{tpu_custom_call.1} parent=0
    #allocation2 [shape = 'u8[589824]{0}', space=vmem, size = 0x90000, scoped, tag = 'input window, operand 0']
    #allocation3 [shape = 's32[2]{0}', space=sflag, size = 0x8, scoped, tag = 'scoped memory for tpu_custom_call.1']
    #allocation4 [shape = 's32[2]{0}', space=sflag, size = 0x8, scoped, tag = 'scoped memory for tpu_custom_call.1']
    #allocation5 [shape = 'u8[18432]{0}', space=vmem, size = 0x4800, scoped, tag = 'input window, operand 1, single buffered']
    #allocation6 [shape = 's32[1]{0}', space=sflag, size = 0x4, scoped, tag = 'scoped memory for tpu_custom_call.1']
    #allocation7 [shape = 'u8[18432]{0}', space=vmem, size = 0x4800, scoped, tag = 'input window, operand 2, single buffered']
    #allocation8 [shape = 'u8[589824]{0}', space=vmem, size = 0x90000, scoped, tag = 'output window, operand 0']
    %8 = vsyncpa [#allocation3], 0
    %s9 = scalar_lea.sflag [#allocation3], 1
    %10 = vsyncpa %s9, 0
    %11 = vsyncpa [#allocation6], 0
    %12 = vsyncpa [#allocation4], 0
    %s13 = scalar_lea.sflag [#allocation4], 1
    %14 = vsyncpa %s13, 0
    loop: start=0, step=1, limit=4
    $region2: #{tpu_custom_call.1} parent=1 // loop_pre_header
      _
    $region3: #{tpu_custom_call.1} parent=1 // loop_header
      %s16 = sphi 0, %s20
      %p17 = scmp.ge.s32.totalorder %s16, 4
      %s23 = sphi 0, %s35
      %s24 = sphi 0, %s31
      %s25 = sphi 0, %s23
      %s26 = sphi 0, %s24
      %s27 = sphi 0, %s25
      %s28 = sphi 0, %s26
      %s40 = sphi 0, %s42
      %s43 = sphi 0, %s40
      %s44 = sphi 0, %s43
      %s60 = sphi 0, %s44
      %s64 = sphi 0, %s64
      %s66 = sphi 0, %s64
      %s67 = sphi 0, %s66
      %s81 = sphi 0, %s67
      %s85 = sphi 0, %s85
      %s87 = sphi 0, %s85
      %s88 = sphi 0, %s87
      %s102 = sphi 0, %s88
      %s110 = sphi 0, %s112
      %s113 = sphi 0, %s110
      %s114 = sphi 0, %s113
      %s130 = sphi 0, %s114
    $region4: #{tpu_custom_call.1} parent=1 // loop_header_branch
      %19 = sbr.rel (%p17) target = $region8
    $region5: #{tpu_custom_call.1} parent=1 // loop_body
      %s21 = ssub.s32 %s16, 1
      %s22 = ssub.s32 %s16, 2
      %s29 = sadd.s32 1, %s24
      %p30 = scmp.ge.s32.totalorder %s29, 1
      %s31 = scalar_select %p30, 0, %s29
      %s32 = sadd.s32 1, %s23
      %s33 = scalar_select %p30, %s32, %s23
      %p34 = scmp.ge.s32.totalorder %s33, 2
      %s35 = scalar_select %p34, 0, %s33
      %s36 = ssub.s32 %s23, %s35
      %s37 = ssub.s32 %s24, %s31
      %s38 = sor.u32 %s36, %s37
      %p39 = scmp.eq.s32.totalorder %s38, 0
      %s41 = sadd.s32 %s40, 1
      %s42 = scalar_select %p39, %s40, %s41
      %p45 = pneg %p39
      %p46 = scmp.eq.s32.totalorder %s16, 1
      %p47 = por %p45, %p46
      %p48 = scmp.ne.s32.totalorder %s40, %s43
      %p49 = scmp.eq.s32.totalorder %s16, 0
      %p50 = por %p48, %p49
      %p51 = scmp.ne.s32.totalorder %s40, %s43
      %p52 = scmp.eq.s32.totalorder %s21, 1
      %p53 = por %p51, %p52
      %p54 = scmp.ne.s32.totalorder %s43, %s44
      %p55 = scmp.eq.s32.totalorder %s21, 0
      %p56 = por %p54, %p55
      %p57 = scmp.ne.s32.totalorder %s43, %s44
      %p58 = scmp.eq.s32.totalorder %s22, 1
      %p59 = por %p57, %p58
      %p61 = scmp.ne.s32.totalorder %s44, %s60
      %p62 = scmp.eq.s32.totalorder %s22, 0
      %p63 = por %p61, %p62
      %s65 = sadd.s32 %s64, 1
      %p68 = scmp.eq.s32.totalorder %s16, 1
      %p69 = scmp.ne.s32.totalorder %s64, %s66
      %p70 = scmp.eq.s32.totalorder %s16, 0
      %p71 = por %p69, %p70
      %p72 = scmp.ne.s32.totalorder %s64, %s66
      %p73 = scmp.eq.s32.totalorder %s21, 1
      %p74 = por %p72, %p73
      %p75 = scmp.ne.s32.totalorder %s66, %s67
      %p76 = scmp.eq.s32.totalorder %s21, 0
      %p77 = por %p75, %p76
      %p78 = scmp.ne.s32.totalorder %s66, %s67
      %p79 = scmp.eq.s32.totalorder %s22, 1
      %p80 = por %p78, %p79
      %p82 = scmp.ne.s32.totalorder %s67, %s81
      %p83 = scmp.eq.s32.totalorder %s22, 0
      %p84 = por %p82, %p83
      %s86 = sadd.s32 %s85, 1
      %p89 = scmp.eq.s32.totalorder %s16, 1
      %p90 = scmp.ne.s32.totalorder %s85, %s87
      %p91 = scmp.eq.s32.totalorder %s16, 0
      %p92 = por %p90, %p91
      %p93 = scmp.ne.s32.totalorder %s85, %s87
      %p94 = scmp.eq.s32.totalorder %s21, 1
      %p95 = por %p93, %p94
      %p96 = scmp.ne.s32.totalorder %s87, %s88
      %p97 = scmp.eq.s32.totalorder %s21, 0
      %p98 = por %p96, %p97
      %p99 = scmp.ne.s32.totalorder %s87, %s88
      %p100 = scmp.eq.s32.totalorder %s22, 1
      %p101 = por %p99, %p100
      %p103 = scmp.ne.s32.totalorder %s88, %s102
      %p104 = scmp.eq.s32.totalorder %s22, 0
      %p105 = por %p103, %p104
      %s106 = ssub.s32 %s23, %s35
      %s107 = ssub.s32 %s24, %s31
      %s108 = sor.u32 %s106, %s107
      %p109 = scmp.eq.s32.totalorder %s108, 0
      %s111 = sadd.s32 %s110, 1
      %s112 = scalar_select %p109, %s110, %s111
      %p115 = pneg %p109
      %p116 = scmp.eq.s32.totalorder %s16, 1
      %p117 = por %p115, %p116
      %p118 = scmp.ne.s32.totalorder %s110, %s113
      %p119 = scmp.eq.s32.totalorder %s16, 0
      %p120 = por %p118, %p119
      %p121 = scmp.ne.s32.totalorder %s110, %s113
      %p122 = scmp.eq.s32.totalorder %s21, 1
      %p123 = por %p121, %p122
      %p124 = scmp.ne.s32.totalorder %s113, %s114
      %p125 = scmp.eq.s32.totalorder %s21, 0
      %p126 = por %p124, %p125
      %p127 = scmp.ne.s32.totalorder %s113, %s114
      %p128 = scmp.eq.s32.totalorder %s22, 1
      %p129 = por %p127, %p128
      %p131 = scmp.ne.s32.totalorder %s114, %s130
      %p132 = scmp.eq.s32.totalorder %s22, 0
      %p133 = por %p131, %p132
      %p134 = scmp.le.s32.totalorder 1, %s16
      %p135 = scmp.lt.s32.totalorder %s16, 3
      %p136 = pnand %p134, %p135
      %p137 = pneg %p136
      // Predicated region
      $region9: #{tpu_custom_call.1} parent=5 // pred_check
        _
      $region10: #{tpu_custom_call.1} parent=5 // pred_check_branch
        %139 = sbr.rel (%p136) target = $region12
      $region11: #{tpu_custom_call.1} parent=5 // pred_region
        %s140 = ssub.s32 %s16, 1
        // Predicated region
        $region13: #{tpu_custom_call.1} parent=11 // pred_check
          %p141 = pneg %p77
        $region14: #{tpu_custom_call.1} parent=11 // pred_check_branch
          %143 = sbr.rel (%p141) target = $region16
        $region15: #{tpu_custom_call.1} parent=11 // pred_region
          %s145 = ssub.s32 576, 576
          %146 = vsyncadd [#allocation6], %s145
          %s147 = sshll.u32 [#allocation5], 4
          %s148 = int_to_ptr.vmem [resolvable:$true] %s147
          %153 = dma.hbm_to_vmem [thread:$0]  %s1, 576, %s148, [#allocation6], 16, 16, 1
        $region16: #{tpu_custom_call.1} parent=11 // pred_fallthru
          _
        // Predicated region
        $region17: #{tpu_custom_call.1} parent=11 // pred_check
          %p154 = pneg %p98
        $region18: #{tpu_custom_call.1} parent=11 // pred_check_branch
          %156 = sbr.rel (%p154) target = $region20
        $region19: #{tpu_custom_call.1} parent=11 // pred_region
          %s158 = ssub.s32 576, 576
          %159 = vsyncadd [#allocation6], %s158
          %s160 = sshll.u32 [#allocation7], 4
          %s161 = int_to_ptr.vmem [resolvable:$true] %s160
          %166 = dma.hbm_to_vmem [thread:$0]  %s2, 576, %s161, [#allocation6], 16, 16, 1
        $region20: #{tpu_custom_call.1} parent=11 // pred_fallthru
          _
      $region12: #{tpu_custom_call.1} parent=5 // pred_fallthru
        _
      %p167 = scmp.lt.s32.totalorder %s16, 2
      // Predicated region
      $region21: #{tpu_custom_call.1} parent=5 // pred_check
        %p168 = pneg %p167
      $region22: #{tpu_custom_call.1} parent=5 // pred_check_branch
        %170 = sbr.rel (%p168) target = $region24
      $region23: #{tpu_custom_call.1} parent=5 // pred_region
        // Predicated region
        $region25: #{tpu_custom_call.1} parent=23 // pred_check
          %p171 = pneg %p50
        $region26: #{tpu_custom_call.1} parent=23 // pred_check_branch
          %173 = sbr.rel (%p171) target = $region28
        $region27: #{tpu_custom_call.1} parent=23 // pred_region
          %s174 = sand.u32 %s40, 1
          %s175 = scalar_lea.sflag [#allocation3], %s174
          %s176 = sand.u32 %s40, 1
          %s177 = smul.addr %s176, 576
          %s178 = scalar_lea.vmem [#allocation2], %s177
          %s179 = smul.u32 2, %s24
          %s181 = ssub.s32 9216, 9216
          %182 = vsyncadd %s175, %s181
          %s183 = smul.addr %s23, 72
          %s184 = sadd.s32 %s179, %s183
          %s185 = smul.addr %s184, 128
          %s186 = scalar_lea.hbm %s0, %s185
          %s187 = sshll.u32 %s178, 4
          %s188 = int_to_ptr.vmem [resolvable:$true] %s187
          %193 = dma.hbm_to_vmem [thread:$0]  %s186, 9216, %s188, %s175, 128, 128, 8
        $region28: #{tpu_custom_call.1} parent=23 // pred_fallthru
          _
      $region24: #{tpu_custom_call.1} parent=5 // pred_fallthru
        _
      %p194 = scmp.le.s32.totalorder 1, %s16
      %p195 = scmp.lt.s32.totalorder %s16, 3
      %p196 = pnand %p194, %p195
      %p197 = pneg %p196
      // Predicated region
      $region29: #{tpu_custom_call.1} parent=5 // pred_check
        _
      $region30: #{tpu_custom_call.1} parent=5 // pred_check_branch
        %199 = sbr.rel (%p196) target = $region32
      $region31: #{tpu_custom_call.1} parent=5 // pred_region
        %s200 = ssub.s32 %s16, 1
        %s201 = sand.u32 %s43, 1
        %s202 = scalar_lea.sflag [#allocation3], %s201
        %s203 = sand.u32 %s43, 1
        %s204 = smul.addr %s203, 576
        %s205 = scalar_lea.vmem [#allocation2], %s204
        // Predicated region
        $region33: #{tpu_custom_call.1} parent=31 // pred_check
          %p206 = pneg %p56
        $region34: #{tpu_custom_call.1} parent=31 // pred_check_branch
          %208 = sbr.rel (%p206) target = $region36
        $region35: #{tpu_custom_call.1} parent=31 // pred_region
          %209 = dma.done %s202, 9216
        $region36: #{tpu_custom_call.1} parent=31 // pred_fallthru
          _
        // Predicated region
        $region37: #{tpu_custom_call.1} parent=31 // pred_check
          %p210 = pneg %p77
        $region38: #{tpu_custom_call.1} parent=31 // pred_check_branch
          %212 = sbr.rel (%p210) target = $region40
        $region39: #{tpu_custom_call.1} parent=31 // pred_region
          %213 = dma.done [#allocation6], 576
        $region40: #{tpu_custom_call.1} parent=31 // pred_fallthru
          _
        // Predicated region
        $region41: #{tpu_custom_call.1} parent=31 // pred_check
          %p214 = pneg %p98
        $region42: #{tpu_custom_call.1} parent=31 // pred_check_branch
          %216 = sbr.rel (%p214) target = $region44
        $region43: #{tpu_custom_call.1} parent=31 // pred_region
          %217 = dma.done [#allocation6], 576
        $region44: #{tpu_custom_call.1} parent=31 // pred_fallthru
          _
        %s218 = sand.u32 %s43, 1
        %s219 = scalar_lea.sflag [#allocation3], %s218
        %s220 = sand.u32 %s43, 1
        %s221 = smul.addr %s220, 576
        %s222 = scalar_lea.vmem [#allocation2], %s221
        %p223 = pneg %p56
        %p224 = pneg %p53
        %p225 = pneg %p77
        %p226 = pneg %p74
        %p227 = pneg %p98
        %p228 = pneg %p95
        %p229 = pneg %p126
        %p230 = pneg %p123
        %s231 = sand.u32 %s113, 1
        %s232 = scalar_lea.sflag [#allocation4], %s231
        %s233 = sand.u32 %s113, 1
        %s234 = smul.addr %s233, 576
        %s235 = scalar_lea.vmem [#allocation8], %s234
        %s236 = smul.u32 2, %s26
        %s237 = smul.u32 2, %s26
        %v238 = vld [vmem:[%s205] sm:$0xff]
        %v239 = vld [vmem:[%s205 + $0x8] sm:$0xff]
        %v240 = vld [vmem:[%s205 + $0x10] sm:$0xff]
        %v241 = vld [vmem:[%s205 + $0x18] sm:$0xff]
        %v242 = vld [vmem:[%s205 + $0x20] sm:$0xff]
        %v243 = vld [vmem:[%s205 + $0x28] sm:$0xff]
        %v244 = vld [vmem:[%s205 + $0x30] sm:$0xff]
        %v245 = vld [vmem:[%s205 + $0x38] sm:$0xff]
        %v246 = vld [vmem:[%s205 + $0x40] sm:$0xff]
        %v247 = vld [vmem:[%s205 + $0x48] sm:$0xff]
        %v248 = vld [vmem:[%s205 + $0x50] sm:$0xff]
        %v249 = vld [vmem:[%s205 + $0x58] sm:$0xff]
        %v250 = vld [vmem:[%s205 + $0x60] sm:$0xff]
        %v251 = vld [vmem:[%s205 + $0x68] sm:$0xff]
        %v252 = vld [vmem:[%s205 + $0x70] sm:$0xff]
        %v253 = vld [vmem:[%s205 + $0x78] sm:$0xff]
        %v254 = vld [vmem:[%s205 + $0x80] sm:$0xff]
        %v255 = vld [vmem:[%s205 + $0x88] sm:$0xff]
        %v256 = vld [vmem:[%s205 + $0x90] sm:$0xff]
        %v257 = vld [vmem:[%s205 + $0x98] sm:$0xff]
        %v258 = vld [vmem:[%s205 + $0xa0] sm:$0xff]
        %v259 = vld [vmem:[%s205 + $0xa8] sm:$0xff]
        %v260 = vld [vmem:[%s205 + $0xb0] sm:$0xff]
        %v261 = vld [vmem:[%s205 + $0xb8] sm:$0xff]
        %v262 = vld [vmem:[%s205 + $0xc0] sm:$0xff]
        %v263 = vld [vmem:[%s205 + $0xc8] sm:$0xff]
        %v264 = vld [vmem:[%s205 + $0xd0] sm:$0xff]
        %v265 = vld [vmem:[%s205 + $0xd8] sm:$0xff]
        %v266 = vld [vmem:[%s205 + $0xe0] sm:$0xff]
        %v267 = vld [vmem:[%s205 + $0xe8] sm:$0xff]
        %v268 = vld [vmem:[%s205 + $0xf0] sm:$0xff]
        %v269 = vld [vmem:[%s205 + $0xf8] sm:$0xff]
        %v270 = vld [vmem:[%s205 + $0x100] sm:$0xff]
        %v271 = vld [vmem:[%s205 + $0x108] sm:$0xff]
        %v272 = vld [vmem:[%s205 + $0x110] sm:$0xff]
        %v273 = vld [vmem:[%s205 + $0x118] sm:$0xff]
        %v274 = vld [vmem:[%s205 + $0x120] sm:$0xff]
        %v275 = vld [vmem:[%s205 + $0x128] sm:$0xff]
        %v276 = vld [vmem:[%s205 + $0x130] sm:$0xff]
        %v277 = vld [vmem:[%s205 + $0x138] sm:$0xff]
        %v278 = vld [vmem:[%s205 + $0x140] sm:$0xff]
        %v279 = vld [vmem:[%s205 + $0x148] sm:$0xff]
        %v280 = vld [vmem:[%s205 + $0x150] sm:$0xff]
        %v281 = vld [vmem:[%s205 + $0x158] sm:$0xff]
        %v282 = vld [vmem:[%s205 + $0x160] sm:$0xff]
        %v283 = vld [vmem:[%s205 + $0x168] sm:$0xff]
        %v284 = vld [vmem:[%s205 + $0x170] sm:$0xff]
        %v285 = vld [vmem:[%s205 + $0x178] sm:$0xff]
        %v286 = vld [vmem:[%s205 + $0x180] sm:$0xff]
        %v287 = vld [vmem:[%s205 + $0x188] sm:$0xff]
        %v288 = vld [vmem:[%s205 + $0x190] sm:$0xff]
        %v289 = vld [vmem:[%s205 + $0x198] sm:$0xff]
        %v290 = vld [vmem:[%s205 + $0x1a0] sm:$0xff]
        %v291 = vld [vmem:[%s205 + $0x1a8] sm:$0xff]
        %v292 = vld [vmem:[%s205 + $0x1b0] sm:$0xff]
        %v293 = vld [vmem:[%s205 + $0x1b8] sm:$0xff]
        %v294 = vld [vmem:[%s205 + $0x1c0] sm:$0xff]
        %v295 = vld [vmem:[%s205 + $0x1c8] sm:$0xff]
        %v296 = vld [vmem:[%s205 + $0x1d0] sm:$0xff]
        %v297 = vld [vmem:[%s205 + $0x1d8] sm:$0xff]
        %v298 = vld [vmem:[%s205 + $0x1e0] sm:$0xff]
        %v299 = vld [vmem:[%s205 + $0x1e8] sm:$0xff]
        %v300 = vld [vmem:[%s205 + $0x1f0] sm:$0xff]
        %v301 = vld [vmem:[%s205 + $0x1f8] sm:$0xff]
        %v302 = vld [vmem:[%s205 + $0x200] sm:$0xff]
        %v303 = vld [vmem:[%s205 + $0x208] sm:$0xff]
        %v304 = vld [vmem:[%s205 + $0x210] sm:$0xff]
        %v305 = vld [vmem:[%s205 + $0x218] sm:$0xff]
        %v306 = vld [vmem:[%s205 + $0x220] sm:$0xff]
        %v307 = vld [vmem:[%s205 + $0x228] sm:$0xff]
        %v308 = vld [vmem:[%s205 + $0x230] sm:$0xff]
        %v309 = vld [vmem:[%s205 + $0x238] sm:$0xff]
        %vm310 = vcmask 130048
        %v311 = vsel %vm310, %v238, 0.0
        %v312 = vsel %vm310, %v240, 0.0
        %v313 = vadd.f32 %v311, %v312
        %v314 = vsel %vm310, %v242, 0.0
        %v315 = vadd.f32 %v313, %v314
        %v316 = vsel %vm310, %v244, 0.0
        %v317 = vadd.f32 %v315, %v316
        %v318 = vsel %vm310, %v246, 0.0
        %v319 = vadd.f32 %v317, %v318
        %v320 = vsel %vm310, %v248, 0.0
        %v321 = vadd.f32 %v319, %v320
        %v322 = vsel %vm310, %v250, 0.0
        %v323 = vadd.f32 %v321, %v322
        %v324 = vsel %vm310, %v252, 0.0
        %v325 = vadd.f32 %v323, %v324
        %v326 = vsel %vm310, %v254, 0.0
        %v327 = vadd.f32 %v325, %v326
        %v328 = vsel %vm310, %v239, 0.0
        %v329 = vsel %vm310, %v241, 0.0
        %v330 = vadd.f32 %v328, %v329
        %v331 = vsel %vm310, %v243, 0.0
        %v332 = vadd.f32 %v330, %v331
        %v333 = vsel %vm310, %v245, 0.0
        %v334 = vadd.f32 %v332, %v333
        %v335 = vsel %vm310, %v247, 0.0
        %v336 = vadd.f32 %v334, %v335
        %v337 = vsel %vm310, %v249, 0.0
        %v338 = vadd.f32 %v336, %v337
        %v339 = vsel %vm310, %v251, 0.0
        %v340 = vadd.f32 %v338, %v339
        %v341 = vsel %vm310, %v253, 0.0
        %v342 = vadd.f32 %v340, %v341
        %v343 = vsel %vm310, %v255, 0.0
        %v344 = vadd.f32 %v342, %v343
        %v345 = vsel %vm310, %v256, 0.0
        %v346 = vsel %vm310, %v258, 0.0
        %v347 = vadd.f32 %v345, %v346
        %v348 = vsel %vm310, %v260, 0.0
        %v349 = vadd.f32 %v347, %v348
        %v350 = vsel %vm310, %v262, 0.0
        %v351 = vadd.f32 %v349, %v350
        %v352 = vsel %vm310, %v264, 0.0
        %v353 = vadd.f32 %v351, %v352
        %v354 = vsel %vm310, %v266, 0.0
        %v355 = vadd.f32 %v353, %v354
        %v356 = vsel %vm310, %v268, 0.0
        %v357 = vadd.f32 %v355, %v356
        %v358 = vsel %vm310, %v270, 0.0
        %v359 = vadd.f32 %v357, %v358
        %v360 = vsel %vm310, %v272, 0.0
        %v361 = vadd.f32 %v359, %v360
        %v362 = vsel %vm310, %v257, 0.0
        %v363 = vsel %vm310, %v259, 0.0
        %v364 = vadd.f32 %v362, %v363
        %v365 = vsel %vm310, %v261, 0.0
        %v366 = vadd.f32 %v364, %v365
        %v367 = vsel %vm310, %v263, 0.0
        %v368 = vadd.f32 %v366, %v367
        %v369 = vsel %vm310, %v265, 0.0
        %v370 = vadd.f32 %v368, %v369
        %v371 = vsel %vm310, %v267, 0.0
        %v372 = vadd.f32 %v370, %v371
        %v373 = vsel %vm310, %v269, 0.0
        %v374 = vadd.f32 %v372, %v373
        %v375 = vsel %vm310, %v271, 0.0
        %v376 = vadd.f32 %v374, %v375
        %v377 = vsel %vm310, %v273, 0.0
        %v378 = vadd.f32 %v376, %v377
        %v379 = vsel %vm310, %v274, 0.0
        %v380 = vsel %vm310, %v276, 0.0
        %v381 = vadd.f32 %v379, %v380
        %v382 = vsel %vm310, %v278, 0.0
        %v383 = vadd.f32 %v381, %v382
        %v384 = vsel %vm310, %v280, 0.0
        %v385 = vadd.f32 %v383, %v384
        %v386 = vsel %vm310, %v282, 0.0
        %v387 = vadd.f32 %v385, %v386
        %v388 = vsel %vm310, %v284, 0.0
        %v389 = vadd.f32 %v387, %v388
        %v390 = vsel %vm310, %v286, 0.0
        %v391 = vadd.f32 %v389, %v390
        %v392 = vsel %vm310, %v288, 0.0
        %v393 = vadd.f32 %v391, %v392
        %v394 = vsel %vm310, %v290, 0.0
        %v395 = vadd.f32 %v393, %v394
        %v396 = vsel %vm310, %v275, 0.0
        %v397 = vsel %vm310, %v277, 0.0
        %v398 = vadd.f32 %v396, %v397
        %v399 = vsel %vm310, %v279, 0.0
        %v400 = vadd.f32 %v398, %v399
        %v401 = vsel %vm310, %v281, 0.0
        %v402 = vadd.f32 %v400, %v401
        %v403 = vsel %vm310, %v283, 0.0
        %v404 = vadd.f32 %v402, %v403
        %v405 = vsel %vm310, %v285, 0.0
        %v406 = vadd.f32 %v404, %v405
        %v407 = vsel %vm310, %v287, 0.0
        %v408 = vadd.f32 %v406, %v407
        %v409 = vsel %vm310, %v289, 0.0
        %v410 = vadd.f32 %v408, %v409
        %v411 = vsel %vm310, %v291, 0.0
        %v412 = vadd.f32 %v410, %v411
        %v413 = vsel %vm310, %v292, 0.0
        %v414 = vsel %vm310, %v294, 0.0
        %v415 = vadd.f32 %v413, %v414
        %v416 = vsel %vm310, %v296, 0.0
        %v417 = vadd.f32 %v415, %v416
        %v418 = vsel %vm310, %v298, 0.0
        %v419 = vadd.f32 %v417, %v418
        %v420 = vsel %vm310, %v300, 0.0
        %v421 = vadd.f32 %v419, %v420
        %v422 = vsel %vm310, %v302, 0.0
        %v423 = vadd.f32 %v421, %v422
        %v424 = vsel %vm310, %v304, 0.0
        %v425 = vadd.f32 %v423, %v424
        %v426 = vsel %vm310, %v306, 0.0
        %v427 = vadd.f32 %v425, %v426
        %v428 = vsel %vm310, %v308, 0.0
        %v429 = vadd.f32 %v427, %v428
        %v430 = vsel %vm310, %v293, 0.0
        %v431 = vsel %vm310, %v295, 0.0
        %v432 = vadd.f32 %v430, %v431
        %v433 = vsel %vm310, %v297, 0.0
        %v434 = vadd.f32 %v432, %v433
        %v435 = vsel %vm310, %v299, 0.0
        %v436 = vadd.f32 %v434, %v435
        %v437 = vsel %vm310, %v301, 0.0
        %v438 = vadd.f32 %v436, %v437
        %v439 = vsel %vm310, %v303, 0.0
        %v440 = vadd.f32 %v438, %v439
        %v441 = vsel %vm310, %v305, 0.0
        %v442 = vadd.f32 %v440, %v441
        %v443 = vsel %vm310, %v307, 0.0
        %v444 = vadd.f32 %v442, %v443
        %v445 = vsel %vm310, %v309, 0.0
        %v446 = vadd.f32 %v444, %v445
        %v447 = vrcp.pop 9.0
        %v448 = vmul.f32 %v327, %v447
        %v449 = vmul.f32 %v344, %v447
        %v450 = vmul.f32 %v361, %v447
        %v451 = vmul.f32 %v378, %v447
        %v452 = vmul.f32 %v395, %v447
        %v453 = vmul.f32 %v412, %v447
        %v454 = vmul.f32 %v429, %v447
        %v455 = vmul.f32 %v446, %v447
        %v456 = vsub.f32 %v238, %v448
        %v457 = vsub.f32 %v239, %v449
        %v458 = vsub.f32 %v240, %v448
        %v459 = vsub.f32 %v241, %v449
        %v460 = vsub.f32 %v242, %v448
        %v461 = vsub.f32 %v243, %v449
        %v462 = vsub.f32 %v244, %v448
        %v463 = vsub.f32 %v245, %v449
        %v464 = vsub.f32 %v246, %v448
        %v465 = vsub.f32 %v247, %v449
        %v466 = vsub.f32 %v248, %v448
        %v467 = vsub.f32 %v249, %v449
        %v468 = vsub.f32 %v250, %v448
        %v469 = vsub.f32 %v251, %v449
        %v470 = vsub.f32 %v252, %v448
        %v471 = vsub.f32 %v253, %v449
        %v472 = vsub.f32 %v254, %v448
        %v473 = vsub.f32 %v255, %v449
        %v474 = vsub.f32 %v256, %v450
        %v475 = vsub.f32 %v257, %v451
        %v476 = vsub.f32 %v258, %v450
        %v477 = vsub.f32 %v259, %v451
        %v478 = vsub.f32 %v260, %v450
        %v479 = vsub.f32 %v261, %v451
        %v480 = vsub.f32 %v262, %v450
        %v481 = vsub.f32 %v263, %v451
        %v482 = vsub.f32 %v264, %v450
        %v483 = vsub.f32 %v265, %v451
        %v484 = vsub.f32 %v266, %v450
        %v485 = vsub.f32 %v267, %v451
        %v486 = vsub.f32 %v268, %v450
        %v487 = vsub.f32 %v269, %v451
        %v488 = vsub.f32 %v270, %v450
        %v489 = vsub.f32 %v271, %v451
        %v490 = vsub.f32 %v272, %v450
        %v491 = vsub.f32 %v273, %v451
        %v492 = vsub.f32 %v274, %v452
        %v493 = vsub.f32 %v275, %v453
        %v494 = vsub.f32 %v276, %v452
        %v495 = vsub.f32 %v277, %v453
        %v496 = vsub.f32 %v278, %v452
        %v497 = vsub.f32 %v279, %v453
        %v498 = vsub.f32 %v280, %v452
        %v499 = vsub.f32 %v281, %v453
        %v500 = vsub.f32 %v282, %v452
        %v501 = vsub.f32 %v283, %v453
        %v502 = vsub.f32 %v284, %v452
        %v503 = vsub.f32 %v285, %v453
        %v504 = vsub.f32 %v286, %v452
        %v505 = vsub.f32 %v287, %v453
        %v506 = vsub.f32 %v288, %v452
        %v507 = vsub.f32 %v289, %v453
        %v508 = vsub.f32 %v290, %v452
        %v509 = vsub.f32 %v291, %v453
        %v510 = vsub.f32 %v292, %v454
        %v511 = vsub.f32 %v293, %v455
        %v512 = vsub.f32 %v294, %v454
        %v513 = vsub.f32 %v295, %v455
        %v514 = vsub.f32 %v296, %v454
        %v515 = vsub.f32 %v297, %v455
        %v516 = vsub.f32 %v298, %v454
        %v517 = vsub.f32 %v299, %v455
        %v518 = vsub.f32 %v300, %v454
        %v519 = vsub.f32 %v301, %v455
        %v520 = vsub.f32 %v302, %v454
        %v521 = vsub.f32 %v303, %v455
        %v522 = vsub.f32 %v304, %v454
        %v523 = vsub.f32 %v305, %v455
        %v524 = vsub.f32 %v306, %v454
        %v525 = vsub.f32 %v307, %v455
        %v526 = vsub.f32 %v308, %v454
        %v527 = vsub.f32 %v309, %v455
        %v528 = vmul.f32 %v456, %v456
        %v529 = vmul.f32 %v457, %v457
        %v530 = vmul.f32 %v458, %v458
        %v531 = vmul.f32 %v459, %v459
        %v532 = vmul.f32 %v460, %v460
        %v533 = vmul.f32 %v461, %v461
        %v534 = vmul.f32 %v462, %v462
        %v535 = vmul.f32 %v463, %v463
        %v536 = vmul.f32 %v464, %v464
        %v537 = vmul.f32 %v465, %v465
        %v538 = vmul.f32 %v466, %v466
        %v539 = vmul.f32 %v467, %v467
        %v540 = vmul.f32 %v468, %v468
        %v541 = vmul.f32 %v469, %v469
        %v542 = vmul.f32 %v470, %v470
        %v543 = vmul.f32 %v471, %v471
        %v544 = vmul.f32 %v472, %v472
        %v545 = vmul.f32 %v473, %v473
        %v546 = vmul.f32 %v474, %v474
        %v547 = vmul.f32 %v475, %v475
        %v548 = vmul.f32 %v476, %v476
        %v549 = vmul.f32 %v477, %v477
        %v550 = vmul.f32 %v478, %v478
        %v551 = vmul.f32 %v479, %v479
        %v552 = vmul.f32 %v480, %v480
        %v553 = vmul.f32 %v481, %v481
        %v554 = vmul.f32 %v482, %v482
        %v555 = vmul.f32 %v483, %v483
        %v556 = vmul.f32 %v484, %v484
        %v557 = vmul.f32 %v485, %v485
        %v558 = vmul.f32 %v486, %v486
        %v559 = vmul.f32 %v487, %v487
        %v560 = vmul.f32 %v488, %v488
        %v561 = vmul.f32 %v489, %v489
        %v562 = vmul.f32 %v490, %v490
        %v563 = vmul.f32 %v491, %v491
        %v564 = vmul.f32 %v492, %v492
        %v565 = vmul.f32 %v493, %v493
        %v566 = vmul.f32 %v494, %v494
        %v567 = vmul.f32 %v495, %v495
        %v568 = vmul.f32 %v496, %v496
        %v569 = vmul.f32 %v497, %v497
        %v570 = vmul.f32 %v498, %v498
        %v571 = vmul.f32 %v499, %v499
        %v572 = vmul.f32 %v500, %v500
        %v573 = vmul.f32 %v501, %v501
        %v574 = vmul.f32 %v502, %v502
        %v575 = vmul.f32 %v503, %v503
        %v576 = vmul.f32 %v504, %v504
        %v577 = vmul.f32 %v505, %v505
        %v578 = vmul.f32 %v506, %v506
        %v579 = vmul.f32 %v507, %v507
        %v580 = vmul.f32 %v508, %v508
        %v581 = vmul.f32 %v509, %v509
        %v582 = vmul.f32 %v510, %v510
        %v583 = vmul.f32 %v511, %v511
        %v584 = vmul.f32 %v512, %v512
        %v585 = vmul.f32 %v513, %v513
        %v586 = vmul.f32 %v514, %v514
        %v587 = vmul.f32 %v515, %v515
        %v588 = vmul.f32 %v516, %v516
        %v589 = vmul.f32 %v517, %v517
        %v590 = vmul.f32 %v518, %v518
        %v591 = vmul.f32 %v519, %v519
        %v592 = vmul.f32 %v520, %v520
        %v593 = vmul.f32 %v521, %v521
        %v594 = vmul.f32 %v522, %v522
        %v595 = vmul.f32 %v523, %v523
        %v596 = vmul.f32 %v524, %v524
        %v597 = vmul.f32 %v525, %v525
        %v598 = vmul.f32 %v526, %v526
        %v599 = vmul.f32 %v527, %v527
        %v600 = vsel %vm310, %v528, 0.0
        %v601 = vsel %vm310, %v530, 0.0
        %v602 = vadd.f32 %v600, %v601
        %v603 = vsel %vm310, %v532, 0.0
        %v604 = vadd.f32 %v602, %v603
        %v605 = vsel %vm310, %v534, 0.0
        %v606 = vadd.f32 %v604, %v605
        %v607 = vsel %vm310, %v536, 0.0
        %v608 = vadd.f32 %v606, %v607
        %v609 = vsel %vm310, %v538, 0.0
        %v610 = vadd.f32 %v608, %v609
        %v611 = vsel %vm310, %v540, 0.0
        %v612 = vadd.f32 %v610, %v611
        %v613 = vsel %vm310, %v542, 0.0
        %v614 = vadd.f32 %v612, %v613
        %v615 = vsel %vm310, %v544, 0.0
        %v616 = vadd.f32 %v614, %v615
        %v617 = vsel %vm310, %v529, 0.0
        %v618 = vsel %vm310, %v531, 0.0
        %v619 = vadd.f32 %v617, %v618
        %v620 = vsel %vm310, %v533, 0.0
        %v621 = vadd.f32 %v619, %v620
        %v622 = vsel %vm310, %v535, 0.0
        %v623 = vadd.f32 %v621, %v622
        %v624 = vsel %vm310, %v537, 0.0
        %v625 = vadd.f32 %v623, %v624
        %v626 = vsel %vm310, %v539, 0.0
        %v627 = vadd.f32 %v625, %v626
        %v628 = vsel %vm310, %v541, 0.0
        %v629 = vadd.f32 %v627, %v628
        %v630 = vsel %vm310, %v543, 0.0
        %v631 = vadd.f32 %v629, %v630
        %v632 = vsel %vm310, %v545, 0.0
        %v633 = vadd.f32 %v631, %v632
        %v634 = vsel %vm310, %v546, 0.0
        %v635 = vsel %vm310, %v548, 0.0
        %v636 = vadd.f32 %v634, %v635
        %v637 = vsel %vm310, %v550, 0.0
        %v638 = vadd.f32 %v636, %v637
        %v639 = vsel %vm310, %v552, 0.0
        %v640 = vadd.f32 %v638, %v639
        %v641 = vsel %vm310, %v554, 0.0
        %v642 = vadd.f32 %v640, %v641
        %v643 = vsel %vm310, %v556, 0.0
        %v644 = vadd.f32 %v642, %v643
        %v645 = vsel %vm310, %v558, 0.0
        %v646 = vadd.f32 %v644, %v645
        %v647 = vsel %vm310, %v560, 0.0
        %v648 = vadd.f32 %v646, %v647
        %v649 = vsel %vm310, %v562, 0.0
        %v650 = vadd.f32 %v648, %v649
        %v651 = vsel %vm310, %v547, 0.0
        %v652 = vsel %vm310, %v549, 0.0
        %v653 = vadd.f32 %v651, %v652
        %v654 = vsel %vm310, %v551, 0.0
        %v655 = vadd.f32 %v653, %v654
        %v656 = vsel %vm310, %v553, 0.0
        %v657 = vadd.f32 %v655, %v656
        %v658 = vsel %vm310, %v555, 0.0
        %v659 = vadd.f32 %v657, %v658
        %v660 = vsel %vm310, %v557, 0.0
        %v661 = vadd.f32 %v659, %v660
        %v662 = vsel %vm310, %v559, 0.0
        %v663 = vadd.f32 %v661, %v662
        %v664 = vsel %vm310, %v561, 0.0
        %v665 = vadd.f32 %v663, %v664
        %v666 = vsel %vm310, %v563, 0.0
        %v667 = vadd.f32 %v665, %v666
        %v668 = vsel %vm310, %v564, 0.0
        %v669 = vsel %vm310, %v566, 0.0
        %v670 = vadd.f32 %v668, %v669
        %v671 = vsel %vm310, %v568, 0.0
        %v672 = vadd.f32 %v670, %v671
        %v673 = vsel %vm310, %v570, 0.0
        %v674 = vadd.f32 %v672, %v673
        %v675 = vsel %vm310, %v572, 0.0
        %v676 = vadd.f32 %v674, %v675
        %v677 = vsel %vm310, %v574, 0.0
        %v678 = vadd.f32 %v676, %v677
        %v679 = vsel %vm310, %v576, 0.0
        %v680 = vadd.f32 %v678, %v679
        %v681 = vsel %vm310, %v578, 0.0
        %v682 = vadd.f32 %v680, %v681
        %v683 = vsel %vm310, %v580, 0.0
        %v684 = vadd.f32 %v682, %v683
        %v685 = vsel %vm310, %v565, 0.0
        %v686 = vsel %vm310, %v567, 0.0
        %v687 = vadd.f32 %v685, %v686
        %v688 = vsel %vm310, %v569, 0.0
        %v689 = vadd.f32 %v687, %v688
        %v690 = vsel %vm310, %v571, 0.0
        %v691 = vadd.f32 %v689, %v690
        %v692 = vsel %vm310, %v573, 0.0
        %v693 = vadd.f32 %v691, %v692
        %v694 = vsel %vm310, %v575, 0.0
        %v695 = vadd.f32 %v693, %v694
        %v696 = vsel %vm310, %v577, 0.0
        %v697 = vadd.f32 %v695, %v696
        %v698 = vsel %vm310, %v579, 0.0
        %v699 = vadd.f32 %v697, %v698
        %v700 = vsel %vm310, %v581, 0.0
        %v701 = vadd.f32 %v699, %v700
        %v702 = vsel %vm310, %v582, 0.0
        %v703 = vsel %vm310, %v584, 0.0
        %v704 = vadd.f32 %v702, %v703
        %v705 = vsel %vm310, %v586, 0.0
        %v706 = vadd.f32 %v704, %v705
        %v707 = vsel %vm310, %v588, 0.0
        %v708 = vadd.f32 %v706, %v707
        %v709 = vsel %vm310, %v590, 0.0
        %v710 = vadd.f32 %v708, %v709
        %v711 = vsel %vm310, %v592, 0.0
        %v712 = vadd.f32 %v710, %v711
        %v713 = vsel %vm310, %v594, 0.0
        %v714 = vadd.f32 %v712, %v713
        %v715 = vsel %vm310, %v596, 0.0
        %v716 = vadd.f32 %v714, %v715
        %v717 = vsel %vm310, %v598, 0.0
        %v718 = vadd.f32 %v716, %v717
        %v719 = vsel %vm310, %v583, 0.0
        %v720 = vsel %vm310, %v585, 0.0
        %v721 = vadd.f32 %v719, %v720
        %v722 = vsel %vm310, %v587, 0.0
        %v723 = vadd.f32 %v721, %v722
        %v724 = vsel %vm310, %v589, 0.0
        %v725 = vadd.f32 %v723, %v724
        %v726 = vsel %vm310, %v591, 0.0
        %v727 = vadd.f32 %v725, %v726
        %v728 = vsel %vm310, %v593, 0.0
        %v729 = vadd.f32 %v727, %v728
        %v730 = vsel %vm310, %v595, 0.0
        %v731 = vadd.f32 %v729, %v730
        %v732 = vsel %vm310, %v597, 0.0
        %v733 = vadd.f32 %v731, %v732
        %v734 = vsel %vm310, %v599, 0.0
        %v735 = vadd.f32 %v733, %v734
        %v736 = vrcp.pop 8.0
        %v737 = vmul.f32 %v616, %v736
        %v738 = vmul.f32 %v633, %v736
        %v739 = vmul.f32 %v650, %v736
        %v740 = vmul.f32 %v667, %v736
        %v741 = vmul.f32 %v684, %v736
        %v742 = vmul.f32 %v701, %v736
        %v743 = vmul.f32 %v718, %v736
        %v744 = vmul.f32 %v735, %v736
        %v745 = vrsqrt.pop %v737
        %v746 = vmul.f32 %v737, %v745
        %vm747 = vcmp.eq.f32.partialorder %v737, inf
        %v748 = vsel %vm747, %v737, %v746
        %vm749 = vcmp.eq.f32.partialorder %v737, 0.0
        %v750 = vand.u32 %v737, 2147483648
        %v751 = vsel %vm749, %v750, %v748
        %v752 = vrsqrt.pop %v738
        %v753 = vmul.f32 %v738, %v752
        %vm754 = vcmp.eq.f32.partialorder %v738, inf
        %v755 = vsel %vm754, %v738, %v753
        %vm756 = vcmp.eq.f32.partialorder %v738, 0.0
        %v757 = vand.u32 %v738, 2147483648
        %v758 = vsel %vm756, %v757, %v755
        %v759 = vrsqrt.pop %v739
        %v760 = vmul.f32 %v739, %v759
        %vm761 = vcmp.eq.f32.partialorder %v739, inf
        %v762 = vsel %vm761, %v739, %v760
        %vm763 = vcmp.eq.f32.partialorder %v739, 0.0
        %v764 = vand.u32 %v739, 2147483648
        %v765 = vsel %vm763, %v764, %v762
        %v766 = vrsqrt.pop %v740
        %v767 = vmul.f32 %v740, %v766
        %vm768 = vcmp.eq.f32.partialorder %v740, inf
        %v769 = vsel %vm768, %v740, %v767
        %vm770 = vcmp.eq.f32.partialorder %v740, 0.0
        %v771 = vand.u32 %v740, 2147483648
        %v772 = vsel %vm770, %v771, %v769
        %v773 = vrsqrt.pop %v741
        %v774 = vmul.f32 %v741, %v773
        %vm775 = vcmp.eq.f32.partialorder %v741, inf
        %v776 = vsel %vm775, %v741, %v774
        %vm777 = vcmp.eq.f32.partialorder %v741, 0.0
        %v778 = vand.u32 %v741, 2147483648
        %v779 = vsel %vm777, %v778, %v776
        %v780 = vrsqrt.pop %v742
        %v781 = vmul.f32 %v742, %v780
        %vm782 = vcmp.eq.f32.partialorder %v742, inf
        %v783 = vsel %vm782, %v742, %v781
        %vm784 = vcmp.eq.f32.partialorder %v742, 0.0
        %v785 = vand.u32 %v742, 2147483648
        %v786 = vsel %vm784, %v785, %v783
        %v787 = vrsqrt.pop %v743
        %v788 = vmul.f32 %v743, %v787
        %vm789 = vcmp.eq.f32.partialorder %v743, inf
        %v790 = vsel %vm789, %v743, %v788
        %vm791 = vcmp.eq.f32.partialorder %v743, 0.0
        %v792 = vand.u32 %v743, 2147483648
        %v793 = vsel %vm791, %v792, %v790
        %v794 = vrsqrt.pop %v744
        %v795 = vmul.f32 %v744, %v794
        %vm796 = vcmp.eq.f32.partialorder %v744, inf
        %v797 = vsel %vm796, %v744, %v795
        %vm798 = vcmp.eq.f32.partialorder %v744, 0.0
        %v799 = vand.u32 %v744, 2147483648
        %v800 = vsel %vm798, %v799, %v797
        %v801 = vadd.f32 %v751, 1e-10
        %v802 = vadd.f32 %v758, 1e-10
        %v803 = vadd.f32 %v765, 1e-10
        %v804 = vadd.f32 %v772, 1e-10
        %v805 = vadd.f32 %v779, 1e-10
        %v806 = vadd.f32 %v786, 1e-10
        %v807 = vadd.f32 %v793, 1e-10
        %v808 = vadd.f32 %v800, 1e-10
        %v809 = vrcp.pop %v801
        %v810 = vrcp.pop %v802
        %v811 = vrcp.pop %v803
        %v812 = vrcp.pop %v804
        %v813 = vrcp.pop %v805
        %v814 = vrcp.pop %v806
        %v815 = vrcp.pop %v807
        %v816 = vrcp.pop %v808
        %v817 = vmul.f32 %v456, %v809
        %v818 = vmul.f32 %v457, %v810
        %v819 = vmul.f32 %v458, %v809
        %v820 = vmul.f32 %v459, %v810
        %v821 = vmul.f32 %v460, %v809
        %v822 = vmul.f32 %v461, %v810
        %v823 = vmul.f32 %v462, %v809
        %v824 = vmul.f32 %v463, %v810
        %v825 = vmul.f32 %v464, %v809
        %v826 = vmul.f32 %v465, %v810
        %v827 = vmul.f32 %v466, %v809
        %v828 = vmul.f32 %v467, %v810
        %v829 = vmul.f32 %v468, %v809
        %v830 = vmul.f32 %v469, %v810
        %v831 = vmul.f32 %v470, %v809
        %v832 = vmul.f32 %v471, %v810
        %v833 = vmul.f32 %v472, %v809
        %v834 = vmul.f32 %v473, %v810
        %v835 = vmul.f32 %v474, %v811
        %v836 = vmul.f32 %v475, %v812
        %v837 = vmul.f32 %v476, %v811
        %v838 = vmul.f32 %v477, %v812
        %v839 = vmul.f32 %v478, %v811
        %v840 = vmul.f32 %v479, %v812
        %v841 = vmul.f32 %v480, %v811
        %v842 = vmul.f32 %v481, %v812
        %v843 = vmul.f32 %v482, %v811
        %v844 = vmul.f32 %v483, %v812
        %v845 = vmul.f32 %v484, %v811
        %v846 = vmul.f32 %v485, %v812
        %v847 = vmul.f32 %v486, %v811
        %v848 = vmul.f32 %v487, %v812
        %v849 = vmul.f32 %v488, %v811
        %v850 = vmul.f32 %v489, %v812
        %v851 = vmul.f32 %v490, %v811
        %v852 = vmul.f32 %v491, %v812
        %v853 = vmul.f32 %v492, %v813
        %v854 = vmul.f32 %v493, %v814
        %v855 = vmul.f32 %v494, %v813
        %v856 = vmul.f32 %v495, %v814
        %v857 = vmul.f32 %v496, %v813
        %v858 = vmul.f32 %v497, %v814
        %v859 = vmul.f32 %v498, %v813
        %v860 = vmul.f32 %v499, %v814
        %v861 = vmul.f32 %v500, %v813
        %v862 = vmul.f32 %v501, %v814
        %v863 = vmul.f32 %v502, %v813
        %v864 = vmul.f32 %v503, %v814
        %v865 = vmul.f32 %v504, %v813
        %v866 = vmul.f32 %v505, %v814
        %v867 = vmul.f32 %v506, %v813
        %v868 = vmul.f32 %v507, %v814
        %v869 = vmul.f32 %v508, %v813
        %v870 = vmul.f32 %v509, %v814
        %v871 = vmul.f32 %v510, %v815
        %v872 = vmul.f32 %v511, %v816
        %v873 = vmul.f32 %v512, %v815
        %v874 = vmul.f32 %v513, %v816
        %v875 = vmul.f32 %v514, %v815
        %v876 = vmul.f32 %v515, %v816
        %v877 = vmul.f32 %v516, %v815
        %v878 = vmul.f32 %v517, %v816
        %v879 = vmul.f32 %v518, %v815
        %v880 = vmul.f32 %v519, %v816
        %v881 = vmul.f32 %v520, %v815
        %v882 = vmul.f32 %v521, %v816
        %v883 = vmul.f32 %v522, %v815
        %v884 = vmul.f32 %v523, %v816
        %v885 = vmul.f32 %v524, %v815
        %v886 = vmul.f32 %v525, %v816
        %v887 = vmul.f32 %v526, %v815
        %v888 = vmul.f32 %v527, %v816
        %v889 = vld [vmem:[#allocation5] sm:$0x1]
        %v890 = vld [vmem:[#allocation5 + $0x1] sm:$0x1]
        %v891 = vld [vmem:[#allocation5 + $0x2] sm:$0x1]
        %v892 = vld [vmem:[#allocation5 + $0x3] sm:$0x1]
        %v893 = vld [vmem:[#allocation5 + $0x4] sm:$0x1]
        %v894 = vld [vmem:[#allocation5 + $0x5] sm:$0x1]
        %v895 = vld [vmem:[#allocation5 + $0x6] sm:$0x1]
        %v896 = vld [vmem:[#allocation5 + $0x7] sm:$0x1]
        %v897 = vld [vmem:[#allocation5 + $0x8] sm:$0x1]
        %v898 = vld [vmem:[#allocation5 + $0x9] sm:$0x1]
        %v899 = vld [vmem:[#allocation5 + $0xa] sm:$0x1]
        %v900 = vld [vmem:[#allocation5 + $0xb] sm:$0x1]
        %v901 = vld [vmem:[#allocation5 + $0xc] sm:$0x1]
        %v902 = vld [vmem:[#allocation5 + $0xd] sm:$0x1]
        %v903 = vld [vmem:[#allocation5 + $0xe] sm:$0x1]
        %v904 = vld [vmem:[#allocation5 + $0xf] sm:$0x1]
        %v905 = vld [vmem:[#allocation5 + $0x10] sm:$0x1]
        %v906 = vld [vmem:[#allocation5 + $0x11] sm:$0x1]
        %v907 = vld [vmem:[#allocation5 + $0x12] sm:$0x1]
        %v908 = vld [vmem:[#allocation5 + $0x13] sm:$0x1]
        %v909 = vld [vmem:[#allocation5 + $0x14] sm:$0x1]
        %v910 = vld [vmem:[#allocation5 + $0x15] sm:$0x1]
        %v911 = vld [vmem:[#allocation5 + $0x16] sm:$0x1]
        %v912 = vld [vmem:[#allocation5 + $0x17] sm:$0x1]
        %v913 = vld [vmem:[#allocation5 + $0x18] sm:$0x1]
        %v914 = vld [vmem:[#allocation5 + $0x19] sm:$0x1]
        %v915 = vld [vmem:[#allocation5 + $0x1a] sm:$0x1]
        %v916 = vld [vmem:[#allocation5 + $0x1b] sm:$0x1]
        %v917 = vld [vmem:[#allocation5 + $0x1c] sm:$0x1]
        %v918 = vld [vmem:[#allocation5 + $0x1d] sm:$0x1]
        %v919 = vld [vmem:[#allocation5 + $0x1e] sm:$0x1]
        %v920 = vld [vmem:[#allocation5 + $0x1f] sm:$0x1]
        %v921 = vld [vmem:[#allocation5 + $0x20] sm:$0x1]
        %v922 = vld [vmem:[#allocation5 + $0x21] sm:$0x1]
        %v923 = vld [vmem:[#allocation5 + $0x22] sm:$0x1]
        %v924 = vld [vmem:[#allocation5 + $0x23] sm:$0x1]
        %v961 = vlaneseq
        %v962 = vshrl.u32 %v961, 7
        %v963 = vsub.s32 0, %v962
        %v964 = vrot.slane %v889, %v963
        %v965 = vlaneseq
        %v966 = vshrl.u32 %v965, 7
        %v967 = vsub.s32 0, %v966
        %v968 = vrot.slane %v890, %v967
        %v969 = vlaneseq
        %v970 = vshrl.u32 %v969, 7
        %v971 = vsub.s32 0, %v970
        %v972 = vrot.slane %v891, %v971
        %v973 = vlaneseq
        %v974 = vshrl.u32 %v973, 7
        %v975 = vsub.s32 0, %v974
        %v976 = vrot.slane %v892, %v975
        %v977 = vlaneseq
        %v978 = vshrl.u32 %v977, 7
        %v979 = vsub.s32 0, %v978
        %v980 = vrot.slane %v893, %v979
        %v981 = vlaneseq
        %v982 = vshrl.u32 %v981, 7
        %v983 = vsub.s32 0, %v982
        %v984 = vrot.slane %v894, %v983
        %v985 = vlaneseq
        %v986 = vshrl.u32 %v985, 7
        %v987 = vsub.s32 0, %v986
        %v988 = vrot.slane %v895, %v987
        %v989 = vlaneseq
        %v990 = vshrl.u32 %v989, 7
        %v991 = vsub.s32 0, %v990
        %v992 = vrot.slane %v896, %v991
        %v993 = vlaneseq
        %v994 = vshrl.u32 %v993, 7
        %v995 = vsub.s32 0, %v994
        %v996 = vrot.slane %v897, %v995
        %v997 = vlaneseq
        %v998 = vshrl.u32 %v997, 7
        %v999 = vsub.s32 0, %v998
        %v1000 = vrot.slane %v898, %v999
        %v1001 = vlaneseq
        %v1002 = vshrl.u32 %v1001, 7
        %v1003 = vsub.s32 0, %v1002
        %v1004 = vrot.slane %v899, %v1003
        %v1005 = vlaneseq
        %v1006 = vshrl.u32 %v1005, 7
        %v1007 = vsub.s32 0, %v1006
        %v1008 = vrot.slane %v900, %v1007
        %v1009 = vlaneseq
        %v1010 = vshrl.u32 %v1009, 7
        %v1011 = vsub.s32 0, %v1010
        %v1012 = vrot.slane %v901, %v1011
        %v1013 = vlaneseq
        %v1014 = vshrl.u32 %v1013, 7
        %v1015 = vsub.s32 0, %v1014
        %v1016 = vrot.slane %v902, %v1015
        %v1017 = vlaneseq
        %v1018 = vshrl.u32 %v1017, 7
        %v1019 = vsub.s32 0, %v1018
        %v1020 = vrot.slane %v903, %v1019
        %v1021 = vlaneseq
        %v1022 = vshrl.u32 %v1021, 7
        %v1023 = vsub.s32 0, %v1022
        %v1024 = vrot.slane %v904, %v1023
        %v1025 = vlaneseq
        %v1026 = vshrl.u32 %v1025, 7
        %v1027 = vsub.s32 0, %v1026
        %v1028 = vrot.slane %v905, %v1027
        %v1029 = vlaneseq
        %v1030 = vshrl.u32 %v1029, 7
        %v1031 = vsub.s32 0, %v1030
        %v1032 = vrot.slane %v906, %v1031
        %v1033 = vlaneseq
        %v1034 = vshrl.u32 %v1033, 7
        %v1035 = vsub.s32 0, %v1034
        %v1036 = vrot.slane %v907, %v1035
        %v1037 = vlaneseq
        %v1038 = vshrl.u32 %v1037, 7
        %v1039 = vsub.s32 0, %v1038
        %v1040 = vrot.slane %v908, %v1039
        %v1041 = vlaneseq
        %v1042 = vshrl.u32 %v1041, 7
        %v1043 = vsub.s32 0, %v1042
        %v1044 = vrot.slane %v909, %v1043
        %v1045 = vlaneseq
        %v1046 = vshrl.u32 %v1045, 7
        %v1047 = vsub.s32 0, %v1046
        %v1048 = vrot.slane %v910, %v1047
        %v1049 = vlaneseq
        %v1050 = vshrl.u32 %v1049, 7
        %v1051 = vsub.s32 0, %v1050
        %v1052 = vrot.slane %v911, %v1051
        %v1053 = vlaneseq
        %v1054 = vshrl.u32 %v1053, 7
        %v1055 = vsub.s32 0, %v1054
        %v1056 = vrot.slane %v912, %v1055
        %v1057 = vlaneseq
        %v1058 = vshrl.u32 %v1057, 7
        %v1059 = vsub.s32 0, %v1058
        %v1060 = vrot.slane %v913, %v1059
        %v1061 = vlaneseq
        %v1062 = vshrl.u32 %v1061, 7
        %v1063 = vsub.s32 0, %v1062
        %v1064 = vrot.slane %v914, %v1063
        %v1065 = vlaneseq
        %v1066 = vshrl.u32 %v1065, 7
        %v1067 = vsub.s32 0, %v1066
        %v1068 = vrot.slane %v915, %v1067
        %v1069 = vlaneseq
        %v1070 = vshrl.u32 %v1069, 7
        %v1071 = vsub.s32 0, %v1070
        %v1072 = vrot.slane %v916, %v1071
        %v1073 = vlaneseq
        %v1074 = vshrl.u32 %v1073, 7
        %v1075 = vsub.s32 0, %v1074
        %v1076 = vrot.slane %v917, %v1075
        %v1077 = vlaneseq
        %v1078 = vshrl.u32 %v1077, 7
        %v1079 = vsub.s32 0, %v1078
        %v1080 = vrot.slane %v918, %v1079
        %v1081 = vlaneseq
        %v1082 = vshrl.u32 %v1081, 7
        %v1083 = vsub.s32 0, %v1082
        %v1084 = vrot.slane %v919, %v1083
        %v1085 = vlaneseq
        %v1086 = vshrl.u32 %v1085, 7
        %v1087 = vsub.s32 0, %v1086
        %v1088 = vrot.slane %v920, %v1087
        %v1089 = vlaneseq
        %v1090 = vshrl.u32 %v1089, 7
        %v1091 = vsub.s32 0, %v1090
        %v1092 = vrot.slane %v921, %v1091
        %v1093 = vlaneseq
        %v1094 = vshrl.u32 %v1093, 7
        %v1095 = vsub.s32 0, %v1094
        %v1096 = vrot.slane %v922, %v1095
        %v1097 = vlaneseq
        %v1098 = vshrl.u32 %v1097, 7
        %v1099 = vsub.s32 0, %v1098
        %v1100 = vrot.slane %v923, %v1099
        %v1101 = vlaneseq
        %v1102 = vshrl.u32 %v1101, 7
        %v1103 = vsub.s32 0, %v1102
        %v1104 = vrot.slane %v924, %v1103
        %v1141 = vmul.f32 %v817, %v964
        %v1142 = vmul.f32 %v818, %v964
        %v1143 = vmul.f32 %v819, %v968
        %v1144 = vmul.f32 %v820, %v968
        %v1145 = vmul.f32 %v821, %v972
        %v1146 = vmul.f32 %v822, %v972
        %v1147 = vmul.f32 %v823, %v976
        %v1148 = vmul.f32 %v824, %v976
        %v1149 = vmul.f32 %v825, %v980
        %v1150 = vmul.f32 %v826, %v980
        %v1151 = vmul.f32 %v827, %v984
        %v1152 = vmul.f32 %v828, %v984
        %v1153 = vmul.f32 %v829, %v988
        %v1154 = vmul.f32 %v830, %v988
        %v1155 = vmul.f32 %v831, %v992
        %v1156 = vmul.f32 %v832, %v992
        %v1157 = vmul.f32 %v833, %v996
        %v1158 = vmul.f32 %v834, %v996
        %v1159 = vmul.f32 %v835, %v1000
        %v1160 = vmul.f32 %v836, %v1000
        %v1161 = vmul.f32 %v837, %v1004
        %v1162 = vmul.f32 %v838, %v1004
        %v1163 = vmul.f32 %v839, %v1008
        %v1164 = vmul.f32 %v840, %v1008
        %v1165 = vmul.f32 %v841, %v1012
        %v1166 = vmul.f32 %v842, %v1012
        %v1167 = vmul.f32 %v843, %v1016
        %v1168 = vmul.f32 %v844, %v1016
        %v1169 = vmul.f32 %v845, %v1020
        %v1170 = vmul.f32 %v846, %v1020
        %v1171 = vmul.f32 %v847, %v1024
        %v1172 = vmul.f32 %v848, %v1024
        %v1173 = vmul.f32 %v849, %v1028
        %v1174 = vmul.f32 %v850, %v1028
        %v1175 = vmul.f32 %v851, %v1032
        %v1176 = vmul.f32 %v852, %v1032
        %v1177 = vmul.f32 %v853, %v1036
        %v1178 = vmul.f32 %v854, %v1036
        %v1179 = vmul.f32 %v855, %v1040
        %v1180 = vmul.f32 %v856, %v1040
        %v1181 = vmul.f32 %v857, %v1044
        %v1182 = vmul.f32 %v858, %v1044
        %v1183 = vmul.f32 %v859, %v1048
        %v1184 = vmul.f32 %v860, %v1048
        %v1185 = vmul.f32 %v861, %v1052
        %v1186 = vmul.f32 %v862, %v1052
        %v1187 = vmul.f32 %v863, %v1056
        %v1188 = vmul.f32 %v864, %v1056
        %v1189 = vmul.f32 %v865, %v1060
        %v1190 = vmul.f32 %v866, %v1060
        %v1191 = vmul.f32 %v867, %v1064
        %v1192 = vmul.f32 %v868, %v1064
        %v1193 = vmul.f32 %v869, %v1068
        %v1194 = vmul.f32 %v870, %v1068
        %v1195 = vmul.f32 %v871, %v1072
        %v1196 = vmul.f32 %v872, %v1072
        %v1197 = vmul.f32 %v873, %v1076
        %v1198 = vmul.f32 %v874, %v1076
        %v1199 = vmul.f32 %v875, %v1080
        %v1200 = vmul.f32 %v876, %v1080
        %v1201 = vmul.f32 %v877, %v1084
        %v1202 = vmul.f32 %v878, %v1084
        %v1203 = vmul.f32 %v879, %v1088
        %v1204 = vmul.f32 %v880, %v1088
        %v1205 = vmul.f32 %v881, %v1092
        %v1206 = vmul.f32 %v882, %v1092
        %v1207 = vmul.f32 %v883, %v1096
        %v1208 = vmul.f32 %v884, %v1096
        %v1209 = vmul.f32 %v885, %v1100
        %v1210 = vmul.f32 %v886, %v1100
        %v1211 = vmul.f32 %v887, %v1104
        %v1212 = vmul.f32 %v888, %v1104
        %v1213 = vld [vmem:[#allocation7] sm:$0x1]
        %v1214 = vld [vmem:[#allocation7 + $0x1] sm:$0x1]
        %v1215 = vld [vmem:[#allocation7 + $0x2] sm:$0x1]
        %v1216 = vld [vmem:[#allocation7 + $0x3] sm:$0x1]
        %v1217 = vld [vmem:[#allocation7 + $0x4] sm:$0x1]
        %v1218 = vld [vmem:[#allocation7 + $0x5] sm:$0x1]
        %v1219 = vld [vmem:[#allocation7 + $0x6] sm:$0x1]
        %v1220 = vld [vmem:[#allocation7 + $0x7] sm:$0x1]
        %v1221 = vld [vmem:[#allocation7 + $0x8] sm:$0x1]
        %v1222 = vld [vmem:[#allocation7 + $0x9] sm:$0x1]
        %v1223 = vld [vmem:[#allocation7 + $0xa] sm:$0x1]
        %v1224 = vld [vmem:[#allocation7 + $0xb] sm:$0x1]
        %v1225 = vld [vmem:[#allocation7 + $0xc] sm:$0x1]
        %v1226 = vld [vmem:[#allocation7 + $0xd] sm:$0x1]
        %v1227 = vld [vmem:[#allocation7 + $0xe] sm:$0x1]
        %v1228 = vld [vmem:[#allocation7 + $0xf] sm:$0x1]
        %v1229 = vld [vmem:[#allocation7 + $0x10] sm:$0x1]
        %v1230 = vld [vmem:[#allocation7 + $0x11] sm:$0x1]
        %v1231 = vld [vmem:[#allocation7 + $0x12] sm:$0x1]
        %v1232 = vld [vmem:[#allocation7 + $0x13] sm:$0x1]
        %v1233 = vld [vmem:[#allocation7 + $0x14] sm:$0x1]
        %v1234 = vld [vmem:[#allocation7 + $0x15] sm:$0x1]
        %v1235 = vld [vmem:[#allocation7 + $0x16] sm:$0x1]
        %v1236 = vld [vmem:[#allocation7 + $0x17] sm:$0x1]
        %v1237 = vld [vmem:[#allocation7 + $0x18] sm:$0x1]
        %v1238 = vld [vmem:[#allocation7 + $0x19] sm:$0x1]
        %v1239 = vld [vmem:[#allocation7 + $0x1a] sm:$0x1]
        %v1240 = vld [vmem:[#allocation7 + $0x1b] sm:$0x1]
        %v1241 = vld [vmem:[#allocation7 + $0x1c] sm:$0x1]
        %v1242 = vld [vmem:[#allocation7 + $0x1d] sm:$0x1]
        %v1243 = vld [vmem:[#allocation7 + $0x1e] sm:$0x1]
        %v1244 = vld [vmem:[#allocation7 + $0x1f] sm:$0x1]
        %v1245 = vld [vmem:[#allocation7 + $0x20] sm:$0x1]
        %v1246 = vld [vmem:[#allocation7 + $0x21] sm:$0x1]
        %v1247 = vld [vmem:[#allocation7 + $0x22] sm:$0x1]
        %v1248 = vld [vmem:[#allocation7 + $0x23] sm:$0x1]
        %v1285 = vlaneseq
        %v1286 = vshrl.u32 %v1285, 7
        %v1287 = vsub.s32 0, %v1286
        %v1288 = vrot.slane %v1213, %v1287
        %v1289 = vlaneseq
        %v1290 = vshrl.u32 %v1289, 7
        %v1291 = vsub.s32 0, %v1290
        %v1292 = vrot.slane %v1214, %v1291
        %v1293 = vlaneseq
        %v1294 = vshrl.u32 %v1293, 7
        %v1295 = vsub.s32 0, %v1294
        %v1296 = vrot.slane %v1215, %v1295
        %v1297 = vlaneseq
        %v1298 = vshrl.u32 %v1297, 7
        %v1299 = vsub.s32 0, %v1298
        %v1300 = vrot.slane %v1216, %v1299
        %v1301 = vlaneseq
        %v1302 = vshrl.u32 %v1301, 7
        %v1303 = vsub.s32 0, %v1302
        %v1304 = vrot.slane %v1217, %v1303
        %v1305 = vlaneseq
        %v1306 = vshrl.u32 %v1305, 7
        %v1307 = vsub.s32 0, %v1306
        %v1308 = vrot.slane %v1218, %v1307
        %v1309 = vlaneseq
        %v1310 = vshrl.u32 %v1309, 7
        %v1311 = vsub.s32 0, %v1310
        %v1312 = vrot.slane %v1219, %v1311
        %v1313 = vlaneseq
        %v1314 = vshrl.u32 %v1313, 7
        %v1315 = vsub.s32 0, %v1314
        %v1316 = vrot.slane %v1220, %v1315
        %v1317 = vlaneseq
        %v1318 = vshrl.u32 %v1317, 7
        %v1319 = vsub.s32 0, %v1318
        %v1320 = vrot.slane %v1221, %v1319
        %v1321 = vlaneseq
        %v1322 = vshrl.u32 %v1321, 7
        %v1323 = vsub.s32 0, %v1322
        %v1324 = vrot.slane %v1222, %v1323
        %v1325 = vlaneseq
        %v1326 = vshrl.u32 %v1325, 7
        %v1327 = vsub.s32 0, %v1326
        %v1328 = vrot.slane %v1223, %v1327
        %v1329 = vlaneseq
        %v1330 = vshrl.u32 %v1329, 7
        %v1331 = vsub.s32 0, %v1330
        %v1332 = vrot.slane %v1224, %v1331
        %v1333 = vlaneseq
        %v1334 = vshrl.u32 %v1333, 7
        %v1335 = vsub.s32 0, %v1334
        %v1336 = vrot.slane %v1225, %v1335
        %v1337 = vlaneseq
        %v1338 = vshrl.u32 %v1337, 7
        %v1339 = vsub.s32 0, %v1338
        %v1340 = vrot.slane %v1226, %v1339
        %v1341 = vlaneseq
        %v1342 = vshrl.u32 %v1341, 7
        %v1343 = vsub.s32 0, %v1342
        %v1344 = vrot.slane %v1227, %v1343
        %v1345 = vlaneseq
        %v1346 = vshrl.u32 %v1345, 7
        %v1347 = vsub.s32 0, %v1346
        %v1348 = vrot.slane %v1228, %v1347
        %v1349 = vlaneseq
        %v1350 = vshrl.u32 %v1349, 7
        %v1351 = vsub.s32 0, %v1350
        %v1352 = vrot.slane %v1229, %v1351
        %v1353 = vlaneseq
        %v1354 = vshrl.u32 %v1353, 7
        %v1355 = vsub.s32 0, %v1354
        %v1356 = vrot.slane %v1230, %v1355
        %v1357 = vlaneseq
        %v1358 = vshrl.u32 %v1357, 7
        %v1359 = vsub.s32 0, %v1358
        %v1360 = vrot.slane %v1231, %v1359
        %v1361 = vlaneseq
        %v1362 = vshrl.u32 %v1361, 7
        %v1363 = vsub.s32 0, %v1362
        %v1364 = vrot.slane %v1232, %v1363
        %v1365 = vlaneseq
        %v1366 = vshrl.u32 %v1365, 7
        %v1367 = vsub.s32 0, %v1366
        %v1368 = vrot.slane %v1233, %v1367
        %v1369 = vlaneseq
        %v1370 = vshrl.u32 %v1369, 7
        %v1371 = vsub.s32 0, %v1370
        %v1372 = vrot.slane %v1234, %v1371
        %v1373 = vlaneseq
        %v1374 = vshrl.u32 %v1373, 7
        %v1375 = vsub.s32 0, %v1374
        %v1376 = vrot.slane %v1235, %v1375
        %v1377 = vlaneseq
        %v1378 = vshrl.u32 %v1377, 7
        %v1379 = vsub.s32 0, %v1378
        %v1380 = vrot.slane %v1236, %v1379
        %v1381 = vlaneseq
        %v1382 = vshrl.u32 %v1381, 7
        %v1383 = vsub.s32 0, %v1382
        %v1384 = vrot.slane %v1237, %v1383
        %v1385 = vlaneseq
        %v1386 = vshrl.u32 %v1385, 7
        %v1387 = vsub.s32 0, %v1386
        %v1388 = vrot.slane %v1238, %v1387
        %v1389 = vlaneseq
        %v1390 = vshrl.u32 %v1389, 7
        %v1391 = vsub.s32 0, %v1390
        %v1392 = vrot.slane %v1239, %v1391
        %v1393 = vlaneseq
        %v1394 = vshrl.u32 %v1393, 7
        %v1395 = vsub.s32 0, %v1394
        %v1396 = vrot.slane %v1240, %v1395
        %v1397 = vlaneseq
        %v1398 = vshrl.u32 %v1397, 7
        %v1399 = vsub.s32 0, %v1398
        %v1400 = vrot.slane %v1241, %v1399
        %v1401 = vlaneseq
        %v1402 = vshrl.u32 %v1401, 7
        %v1403 = vsub.s32 0, %v1402
        %v1404 = vrot.slane %v1242, %v1403
        %v1405 = vlaneseq
        %v1406 = vshrl.u32 %v1405, 7
        %v1407 = vsub.s32 0, %v1406
        %v1408 = vrot.slane %v1243, %v1407
        %v1409 = vlaneseq
        %v1410 = vshrl.u32 %v1409, 7
        %v1411 = vsub.s32 0, %v1410
        %v1412 = vrot.slane %v1244, %v1411
        %v1413 = vlaneseq
        %v1414 = vshrl.u32 %v1413, 7
        %v1415 = vsub.s32 0, %v1414
        %v1416 = vrot.slane %v1245, %v1415
        %v1417 = vlaneseq
        %v1418 = vshrl.u32 %v1417, 7
        %v1419 = vsub.s32 0, %v1418
        %v1420 = vrot.slane %v1246, %v1419
        %v1421 = vlaneseq
        %v1422 = vshrl.u32 %v1421, 7
        %v1423 = vsub.s32 0, %v1422
        %v1424 = vrot.slane %v1247, %v1423
        %v1425 = vlaneseq
        %v1426 = vshrl.u32 %v1425, 7
        %v1427 = vsub.s32 0, %v1426
        %v1428 = vrot.slane %v1248, %v1427
        %v1465 = vadd.f32 %v1141, %v1288
        %v1466 = vadd.f32 %v1142, %v1288
        %v1467 = vadd.f32 %v1143, %v1292
        %v1468 = vadd.f32 %v1144, %v1292
        %v1469 = vadd.f32 %v1145, %v1296
        %v1470 = vadd.f32 %v1146, %v1296
        %v1471 = vadd.f32 %v1147, %v1300
        %v1472 = vadd.f32 %v1148, %v1300
        %v1473 = vadd.f32 %v1149, %v1304
        %v1474 = vadd.f32 %v1150, %v1304
        %v1475 = vadd.f32 %v1151, %v1308
        %v1476 = vadd.f32 %v1152, %v1308
        %v1477 = vadd.f32 %v1153, %v1312
        %v1478 = vadd.f32 %v1154, %v1312
        %v1479 = vadd.f32 %v1155, %v1316
        %v1480 = vadd.f32 %v1156, %v1316
        %v1481 = vadd.f32 %v1157, %v1320
        %v1482 = vadd.f32 %v1158, %v1320
        %v1483 = vadd.f32 %v1159, %v1324
        %v1484 = vadd.f32 %v1160, %v1324
        %v1485 = vadd.f32 %v1161, %v1328
        %v1486 = vadd.f32 %v1162, %v1328
        %v1487 = vadd.f32 %v1163, %v1332
        %v1488 = vadd.f32 %v1164, %v1332
        %v1489 = vadd.f32 %v1165, %v1336
        %v1490 = vadd.f32 %v1166, %v1336
        %v1491 = vadd.f32 %v1167, %v1340
        %v1492 = vadd.f32 %v1168, %v1340
        %v1493 = vadd.f32 %v1169, %v1344
        %v1494 = vadd.f32 %v1170, %v1344
        %v1495 = vadd.f32 %v1171, %v1348
        %v1496 = vadd.f32 %v1172, %v1348
        %v1497 = vadd.f32 %v1173, %v1352
        %v1498 = vadd.f32 %v1174, %v1352
        %v1499 = vadd.f32 %v1175, %v1356
        %v1500 = vadd.f32 %v1176, %v1356
        %v1501 = vadd.f32 %v1177, %v1360
        %v1502 = vadd.f32 %v1178, %v1360
        %v1503 = vadd.f32 %v1179, %v1364
        %v1504 = vadd.f32 %v1180, %v1364
        %v1505 = vadd.f32 %v1181, %v1368
        %v1506 = vadd.f32 %v1182, %v1368
        %v1507 = vadd.f32 %v1183, %v1372
        %v1508 = vadd.f32 %v1184, %v1372
        %v1509 = vadd.f32 %v1185, %v1376
        %v1510 = vadd.f32 %v1186, %v1376
        %v1511 = vadd.f32 %v1187, %v1380
        %v1512 = vadd.f32 %v1188, %v1380
        %v1513 = vadd.f32 %v1189, %v1384
        %v1514 = vadd.f32 %v1190, %v1384
        %v1515 = vadd.f32 %v1191, %v1388
        %v1516 = vadd.f32 %v1192, %v1388
        %v1517 = vadd.f32 %v1193, %v1392
        %v1518 = vadd.f32 %v1194, %v1392
        %v1519 = vadd.f32 %v1195, %v1396
        %v1520 = vadd.f32 %v1196, %v1396
        %v1521 = vadd.f32 %v1197, %v1400
        %v1522 = vadd.f32 %v1198, %v1400
        %v1523 = vadd.f32 %v1199, %v1404
        %v1524 = vadd.f32 %v1200, %v1404
        %v1525 = vadd.f32 %v1201, %v1408
        %v1526 = vadd.f32 %v1202, %v1408
        %v1527 = vadd.f32 %v1203, %v1412
        %v1528 = vadd.f32 %v1204, %v1412
        %v1529 = vadd.f32 %v1205, %v1416
        %v1530 = vadd.f32 %v1206, %v1416
        %v1531 = vadd.f32 %v1207, %v1420
        %v1532 = vadd.f32 %v1208, %v1420
        %v1533 = vadd.f32 %v1209, %v1424
        %v1534 = vadd.f32 %v1210, %v1424
        %v1535 = vadd.f32 %v1211, %v1428
        %v1536 = vadd.f32 %v1212, %v1428
        %1537 = vst.msk [vmem:[%s235] sm:$0xff] %vm310, %v1465
        %1538 = vst.msk [vmem:[%s235 + $0x8] sm:$0xff] %vm310, %v1466
        %1539 = vst.msk [vmem:[%s235 + $0x10] sm:$0xff] %vm310, %v1467
        %1540 = vst.msk [vmem:[%s235 + $0x18] sm:$0xff] %vm310, %v1468
        %1541 = vst.msk [vmem:[%s235 + $0x20] sm:$0xff] %vm310, %v1469
        %1542 = vst.msk [vmem:[%s235 + $0x28] sm:$0xff] %vm310, %v1470
        %1543 = vst.msk [vmem:[%s235 + $0x30] sm:$0xff] %vm310, %v1471
        %1544 = vst.msk [vmem:[%s235 + $0x38] sm:$0xff] %vm310, %v1472
        %1545 = vst.msk [vmem:[%s235 + $0x40] sm:$0xff] %vm310, %v1473
        %1546 = vst.msk [vmem:[%s235 + $0x48] sm:$0xff] %vm310, %v1474
        %1547 = vst.msk [vmem:[%s235 + $0x50] sm:$0xff] %vm310, %v1475
        %1548 = vst.msk [vmem:[%s235 + $0x58] sm:$0xff] %vm310, %v1476
        %1549 = vst.msk [vmem:[%s235 + $0x60] sm:$0xff] %vm310, %v1477
        %1550 = vst.msk [vmem:[%s235 + $0x68] sm:$0xff] %vm310, %v1478
        %1551 = vst.msk [vmem:[%s235 + $0x70] sm:$0xff] %vm310, %v1479
        %1552 = vst.msk [vmem:[%s235 + $0x78] sm:$0xff] %vm310, %v1480
        %1553 = vst.msk [vmem:[%s235 + $0x80] sm:$0xff] %vm310, %v1481
        %1554 = vst.msk [vmem:[%s235 + $0x88] sm:$0xff] %vm310, %v1482
        %1555 = vst.msk [vmem:[%s235 + $0x90] sm:$0xff] %vm310, %v1483
        %1556 = vst.msk [vmem:[%s235 + $0x98] sm:$0xff] %vm310, %v1484
        %1557 = vst.msk [vmem:[%s235 + $0xa0] sm:$0xff] %vm310, %v1485
        %1558 = vst.msk [vmem:[%s235 + $0xa8] sm:$0xff] %vm310, %v1486
        %1559 = vst.msk [vmem:[%s235 + $0xb0] sm:$0xff] %vm310, %v1487
        %1560 = vst.msk [vmem:[%s235 + $0xb8] sm:$0xff] %vm310, %v1488
        %1561 = vst.msk [vmem:[%s235 + $0xc0] sm:$0xff] %vm310, %v1489
        %1562 = vst.msk [vmem:[%s235 + $0xc8] sm:$0xff] %vm310, %v1490
        %1563 = vst.msk [vmem:[%s235 + $0xd0] sm:$0xff] %vm310, %v1491
        %1564 = vst.msk [vmem:[%s235 + $0xd8] sm:$0xff] %vm310, %v1492
        %1565 = vst.msk [vmem:[%s235 + $0xe0] sm:$0xff] %vm310, %v1493
        %1566 = vst.msk [vmem:[%s235 + $0xe8] sm:$0xff] %vm310, %v1494
        %1567 = vst.msk [vmem:[%s235 + $0xf0] sm:$0xff] %vm310, %v1495
        %1568 = vst.msk [vmem:[%s235 + $0xf8] sm:$0xff] %vm310, %v1496
        %1569 = vst.msk [vmem:[%s235 + $0x100] sm:$0xff] %vm310, %v1497
        %1570 = vst.msk [vmem:[%s235 + $0x108] sm:$0xff] %vm310, %v1498
        %1571 = vst.msk [vmem:[%s235 + $0x110] sm:$0xff] %vm310, %v1499
        %1572 = vst.msk [vmem:[%s235 + $0x118] sm:$0xff] %vm310, %v1500
        %1573 = vst.msk [vmem:[%s235 + $0x120] sm:$0xff] %vm310, %v1501
        %1574 = vst.msk [vmem:[%s235 + $0x128] sm:$0xff] %vm310, %v1502
        %1575 = vst.msk [vmem:[%s235 + $0x130] sm:$0xff] %vm310, %v1503
        %1576 = vst.msk [vmem:[%s235 + $0x138] sm:$0xff] %vm310, %v1504
        %1577 = vst.msk [vmem:[%s235 + $0x140] sm:$0xff] %vm310, %v1505
        %1578 = vst.msk [vmem:[%s235 + $0x148] sm:$0xff] %vm310, %v1506
        %1579 = vst.msk [vmem:[%s235 + $0x150] sm:$0xff] %vm310, %v1507
        %1580 = vst.msk [vmem:[%s235 + $0x158] sm:$0xff] %vm310, %v1508
        %1581 = vst.msk [vmem:[%s235 + $0x160] sm:$0xff] %vm310, %v1509
        %1582 = vst.msk [vmem:[%s235 + $0x168] sm:$0xff] %vm310, %v1510
        %1583 = vst.msk [vmem:[%s235 + $0x170] sm:$0xff] %vm310, %v1511
        %1584 = vst.msk [vmem:[%s235 + $0x178] sm:$0xff] %vm310, %v1512
        %1585 = vst.msk [vmem:[%s235 + $0x180] sm:$0xff] %vm310, %v1513
        %1586 = vst.msk [vmem:[%s235 + $0x188] sm:$0xff] %vm310, %v1514
        %1587 = vst.msk [vmem:[%s235 + $0x190] sm:$0xff] %vm310, %v1515
        %1588 = vst.msk [vmem:[%s235 + $0x198] sm:$0xff] %vm310, %v1516
        %1589 = vst.msk [vmem:[%s235 + $0x1a0] sm:$0xff] %vm310, %v1517
        %1590 = vst.msk [vmem:[%s235 + $0x1a8] sm:$0xff] %vm310, %v1518
        %1591 = vst.msk [vmem:[%s235 + $0x1b0] sm:$0xff] %vm310, %v1519
        %1592 = vst.msk [vmem:[%s235 + $0x1b8] sm:$0xff] %vm310, %v1520
        %1593 = vst.msk [vmem:[%s235 + $0x1c0] sm:$0xff] %vm310, %v1521
        %1594 = vst.msk [vmem:[%s235 + $0x1c8] sm:$0xff] %vm310, %v1522
        %1595 = vst.msk [vmem:[%s235 + $0x1d0] sm:$0xff] %vm310, %v1523
        %1596 = vst.msk [vmem:[%s235 + $0x1d8] sm:$0xff] %vm310, %v1524
        %1597 = vst.msk [vmem:[%s235 + $0x1e0] sm:$0xff] %vm310, %v1525
        %1598 = vst.msk [vmem:[%s235 + $0x1e8] sm:$0xff] %vm310, %v1526
        %1599 = vst.msk [vmem:[%s235 + $0x1f0] sm:$0xff] %vm310, %v1527
        %1600 = vst.msk [vmem:[%s235 + $0x1f8] sm:$0xff] %vm310, %v1528
        %1601 = vst.msk [vmem:[%s235 + $0x200] sm:$0xff] %vm310, %v1529
        %1602 = vst.msk [vmem:[%s235 + $0x208] sm:$0xff] %vm310, %v1530
        %1603 = vst.msk [vmem:[%s235 + $0x210] sm:$0xff] %vm310, %v1531
        %1604 = vst.msk [vmem:[%s235 + $0x218] sm:$0xff] %vm310, %v1532
        %1605 = vst.msk [vmem:[%s235 + $0x220] sm:$0xff] %vm310, %v1533
        %1606 = vst.msk [vmem:[%s235 + $0x228] sm:$0xff] %vm310, %v1534
        %1607 = vst.msk [vmem:[%s235 + $0x230] sm:$0xff] %vm310, %v1535
        %1608 = vst.msk [vmem:[%s235 + $0x238] sm:$0xff] %vm310, %v1536
        %s1609 = sand.u32 %s113, 1
        %s1610 = scalar_lea.sflag [#allocation4], %s1609
        %s1611 = sand.u32 %s113, 1
        %s1612 = smul.addr %s1611, 576
        %s1613 = scalar_lea.vmem [#allocation8], %s1612
        // Predicated region
        $region45: #{tpu_custom_call.1} parent=31 // pred_check
          %p1614 = pneg %p123
        $region46: #{tpu_custom_call.1} parent=31 // pred_check_branch
          %1616 = sbr.rel (%p1614) target = $region48
        $region47: #{tpu_custom_call.1} parent=31 // pred_region
          %s1617 = smul.u32 2, %s26
          %s1619 = ssub.s32 9216, 9216
          %1620 = vsyncadd %s1610, %s1619
          %s1621 = smul.addr %s25, 72
          %s1622 = sadd.s32 %s1617, %s1621
          %s1623 = smul.addr %s1622, 128
          %s1624 = scalar_lea.hbm %s3, %s1623
          %s1625 = sshll.u32 %s1613, 4
          %s1626 = int_to_ptr.vmem [resolvable:$true] %s1625
          %1631 = dma.vmem_to_hbm [thread:$0]  %s1626, 9216, %s1624, %s1610, 128, 128, 8
        $region48: #{tpu_custom_call.1} parent=31 // pred_fallthru
          _
      $region32: #{tpu_custom_call.1} parent=5 // pred_fallthru
        _
      %p1632 = scmp.le.s32.totalorder 2, %s16
      // Predicated region
      $region49: #{tpu_custom_call.1} parent=5 // pred_check
        %p1633 = pneg %p1632
      $region50: #{tpu_custom_call.1} parent=5 // pred_check_branch
        %1635 = sbr.rel (%p1633) target = $region52
      $region51: #{tpu_custom_call.1} parent=5 // pred_region
        %s1636 = ssub.s32 %s16, 2
        // Predicated region
        $region53: #{tpu_custom_call.1} parent=51 // pred_check
          %p1637 = pneg %p129
        $region54: #{tpu_custom_call.1} parent=51 // pred_check_branch
          %1639 = sbr.rel (%p1637) target = $region56
        $region55: #{tpu_custom_call.1} parent=51 // pred_region
          %s1640 = sand.u32 %s114, 1
          %s1641 = scalar_lea.sflag [#allocation4], %s1640
          %s1642 = sand.u32 %s114, 1
          %s1643 = smul.addr %s1642, 576
          %s1644 = scalar_lea.vmem [#allocation8], %s1643
          %1645 = dma.done %s1641, 9216
        $region56: #{tpu_custom_call.1} parent=51 // pred_fallthru
          _
      $region52: #{tpu_custom_call.1} parent=5 // pred_fallthru
        _
    $region6: #{tpu_custom_call.1} parent=1 // loop_footer
      %s20 = sadd.s32 1, %s16
    $region7: #{tpu_custom_call.1} parent=1 // loop_footer_branch
      %15 = sbr.rel target = $region3
    $region8: #{tpu_custom_call.1} parent=1 // loop_exit
      _
    %1646 = vsyncpa [#allocation3], 1
    %s1647 = scalar_lea.sflag [#allocation3], 1
    %1648 = vsyncpa %s1647, 1
    %1649 = vsyncpa [#allocation6], 1
    %1650 = vsyncpa [#allocation4], 1
    %s1651 = scalar_lea.sflag [#allocation4], 1
    %1652 = vsyncpa %s1651, 1

</llo_original>
